<compile_context>
chip_gen: v7x
topology: tpu7x:2x2x1
jax: 0.10.0
libtpu: 0.0.40
codegen_flags: <defaults>
</compile_context>

<pallas_src>
import jax
import jax.numpy as jnp
from jax import lax
from jax.experimental import pallas as pl
from jax.experimental.pallas import tpu as pltpu

NEG_INF = -1e30
CTC_TIME_CHUNK = 16


def _round_up(x, m):
    return ((x + m - 1) // m) * m


def _select_hw_params():
    """Per-generation scoped-VMEM limit and default row-tile size."""
    try:
        phys = int(pltpu.get_tpu_info().vmem_capacity_bytes)
    except Exception:
        phys = 64 * 2 ** 20
    if phys >= 100 * 2 ** 20:          # v5e / v6e: 128 MiB physical VMEM
        return 100 * 2 ** 20, 512
    return 48 * 2 ** 20, 256            # v7x (64 MiB physical) / unknown


# --------------------------------------------------------------------------
# Kernel 1: Linear(F->V) + online (vocab-tiled) log-softmax normalizer +
#           extended-label column gather via pre-gathered weight columns.
# --------------------------------------------------------------------------
def proj_lse_gather_kernel(x_ref, w_ref, b_ref, wext_ref, bext_ref, o_ref,
                           m_ref, l_ref):
    # x_ref   : (TT, Fp)  bf16  frame block for one (batch, row-tile)
    # w_ref   : (Fp, TV)  bf16  vocab chunk of the projection weight
    # b_ref   : (1, TV)   f32   bias chunk (padded vocab lanes = NEG_INF)
    # wext_ref: (Fp, Sp)  bf16  pre-gathered weight columns w[:, ext[b]]
    # bext_ref: (1, Sp)   f32   pre-gathered bias b[ext[b]]
    # o_ref   : (TT, Sp)  f32   log_softmax(x@w+b)[:, ext[b]]
    # m_ref/l_ref: (TT,1) f32   online-softmax running max / denominator
    k = pl.program_id(2)

    zc = jnp.dot(x_ref[...], w_ref[...],
                 preferred_element_type=jnp.float32) + b_ref[...]
    cmax = jnp.max(zc, axis=-1, keepdims=True)

    @pl.when(k == 0)
    def _():
        m_ref[...] = jnp.full(m_ref.shape, NEG_INF, dtype=jnp.float32)
        l_ref[...] = jnp.zeros(l_ref.shape, dtype=jnp.float32)

    m_prev = m_ref[...]
    m_new = jnp.maximum(m_prev, cmax)
    l_ref[...] = (l_ref[...] * jnp.exp(m_prev - m_new)
                  + jnp.sum(jnp.exp(zc - m_new), axis=-1, keepdims=True))
    m_ref[...] = m_new

    @pl.when(k == pl.num_programs(2) - 1)
    def _():
        lse = m_ref[...] + jnp.log(l_ref[...])
        g = jnp.dot(x_ref[...], wext_ref[...],
                    preferred_element_type=jnp.float32) + bext_ref[...]
        o_ref[...] = g - lse


def infer_lp_ext(x, w, b, ext):
    """Fused Linear(F->V) + log_softmax + CTC extended-label gather.

    x: (B, T, F) f32, w: (F, V), b: (V,) or (1, V), ext: (B, S) int32.
    Returns lp_ext: (B, Tp, Sp) f32 with
      lp_ext[b, t, s] = log_softmax(x[b, t] @ w + b)[ext[b, s]]  (t < T, s < S)
    (rows t >= T / lanes s >= S are finite padding, masked downstream).
    """
    B, T, F = x.shape
    V = w.shape[1]
    S = ext.shape[1]

    vmem_limit, max_tile_rows = _select_hw_params()

    Fp = _round_up(F, 128)
    Sp = _round_up(S, 128)

    # Vocab: lane-pad to 128, then split into <=2048-wide chunks with minimal
    # extra padding (this is the online-softmax reduction axis).
    Vp = _round_up(V, 128)
    n_v = -(-Vp // 2048)
    tile_v = _round_up(-(-Vp // n_v), 128)
    Vp = tile_v * n_v

    # Rows: tile_rows multiple of 16 (bf16 sublane packing) chosen so the
    # T-padding waste is < 16 rows per tile instead of a whole tile.
    n_r = -(-T // max_tile_rows)
    tile_rows = _round_up(-(-T // n_r), 16)
    Tp = tile_rows * n_r

    w_bf = w.astype(jnp.bfloat16)
    b1 = jnp.reshape(b, (-1,)).astype(jnp.float32)

    x_p = jnp.zeros((B, Tp, Fp), jnp.bfloat16).at[:, :T, :F].set(
        x.astype(jnp.bfloat16))
    w_p = jnp.zeros((Fp, Vp), jnp.bfloat16).at[:F, :V].set(w_bf)
    b_p = jnp.full((1, Vp), NEG_INF, jnp.float32).at[0, :V].set(b1)

    # Pre-gathered extended-label columns: replaces the one-hot gather matmul.
    # Same bf16 operands as the full projection -> identical gathered logits.
    w_ext = jnp.transpose(w_bf[:, ext], (1, 0, 2))               # (B, F, S)
    w_ext_p = jnp.zeros((B, Fp, Sp), jnp.bfloat16).at[:, :F, :S].set(w_ext)
    b_ext = b1[ext]                                               # (B, S)
    b_ext_p = jnp.zeros((B, 1, Sp), jnp.float32).at[:, 0, :S].set(b_ext)

    grid = (B, n_r, n_v)

    flops = 2 * B * Tp * Fp * Vp + 2 * B * Tp * Fp * Sp
    transcendentals = B * Tp * Vp + B * Tp
    bytes_accessed = (x_p.size * 2 + B * n_r * Fp * Vp * 2
                      + w_ext_p.size * 2 + b_ext_p.size * 4
                      + B * Tp * Sp * 4)

    return pl.pallas_call(
        proj_lse_gather_kernel,
        out_shape=jax.ShapeDtypeStruct((B, Tp, Sp), jnp.float32),
        grid=grid,
        in_specs=[
            pl.BlockSpec((None, tile_rows, Fp), lambda bb, i, k: (bb, i, 0)),
            pl.BlockSpec((Fp, tile_v), lambda bb, i, k: (0, k)),
            pl.BlockSpec((1, tile_v), lambda bb, i, k: (0, k)),
            pl.BlockSpec((None, Fp, Sp), lambda bb, i, k: (bb, 0, 0)),
            pl.BlockSpec((None, 1, Sp), lambda bb, i, k: (bb, 0, 0)),
        ],
        out_specs=pl.BlockSpec((None, tile_rows, Sp),
                               lambda bb, i, k: (bb, i, 0)),
        scratch_shapes=[pltpu.VMEM((tile_rows, 1), jnp.float32),
                        pltpu.VMEM((tile_rows, 1), jnp.float32)],
        compiler_params=pltpu.CompilerParams(
            dimension_semantics=("parallel", "parallel", "arbitrary"),
            vmem_limit_bytes=vmem_limit),
        cost_estimate=pl.CostEstimate(
            flops=flops, transcendentals=transcendentals,
            bytes_accessed=bytes_accessed),
    )(x_p, w_p, b_p, w_ext_p, b_ext_p)


# --------------------------------------------------------------------------
# Kernel 2: CTC forward (alpha) recursion with the (B, Sp) state resident in
# VMEM; log-probs streamed in time chunks; lane shifts via pltpu.roll.
# --------------------------------------------------------------------------
def ctc_alpha_kernel(lens_ref, valid_ref, skip_ref, lp_ref, alpha_ref):
    # lens_ref : (B, 1)      int32  input_lengths
    # valid_ref: (B, Sp)     f32    1.0 where s < 2*label_len+1
    # skip_ref : (B, Sp)     f32    1.0 where the s-2 skip transition is legal
    # lp_ref   : (B, TC, Sp) f32    gathered log-probs for this time chunk
    # alpha_ref: (B, Sp)     f32    alpha state (resident output block)
    B, TC, Sp = lp_ref.shape
    tc = pl.program_id(0)

    s_idx = lax.broadcasted_iota(jnp.int32, (B, Sp), 1)
    valid = valid_ref[...] > 0.5
    skip = skip_ref[...] > 0.5
    lens = lens_ref[...]                       # (B, 1) int32

    @pl.when(tc == 0)
    def _():
        lp0 = lp_ref[:, 0, :]
        alpha_ref[...] = jnp.where(jnp.logical_and(s_idx <= 1, valid),
                                   lp0, NEG_INF)

    alpha = alpha_ref[...]
    for j in range(TC):                        # static unroll over the chunk
        t = tc * TC + j
        lp_t = lp_ref[:, j, :]
        a0 = alpha
        a1 = jnp.where(s_idx >= 1, pltpu.roll(alpha, shift=1, axis=1), NEG_INF)
        a2 = jnp.where(jnp.logical_and(s_idx >= 2, skip),
                       pltpu.roll(alpha, shift=2, axis=1), NEG_INF)
        m = jnp.maximum(jnp.maximum(a0, a1), a2)
        lse3 = m + jnp.log(jnp.exp(a0 - m) + jnp.exp(a1 - m) + jnp.exp(a2 - m))
        new = jnp.where(valid, lse3 + lp_t, NEG_INF)
        active = jnp.logical_and(t >= 1, t < lens)        # (B, 1) broadcast
        alpha = jnp.where(active, new, alpha)
    alpha_ref[...] = alpha


def ctc_alpha(lp_ext, ext, input_lengths, label_lengths, *, blank=0):
    B, Tp, Sp = lp_ext.shape
    S = ext.shape[1]
    TC = CTC_TIME_CHUNK
    assert Tp % TC == 0  # Tp is a multiple of 16 by construction in kernel 1

    s_len = 2 * label_lengths.astype(jnp.int32) + 1
    valid_f = (jnp.arange(Sp, dtype=jnp.int32)[None, :]
               < s_len[:, None]).astype(jnp.float32)
    ext_m2 = jnp.pad(ext, ((0, 0), (2, 0)), constant_values=blank)[:, :S]
    allow_skip = (ext != blank) & (ext != ext_m2)
    skip_f = jnp.zeros((B, Sp), jnp.float32).at[:, :S].set(
        allow_skip.astype(jnp.float32))
    lens = input_lengths.astype(jnp.int32).reshape(B, 1)

    return pl.pallas_call(
        ctc_alpha_kernel,
        out_shape=jax.ShapeDtypeStruct((B, Sp), jnp.float32),
        grid=(Tp // TC,),
        in_specs=[
            pl.BlockSpec((B, 1), lambda t: (0, 0)),
            pl.BlockSpec((B, Sp), lambda t: (0, 0)),
            pl.BlockSpec((B, Sp), lambda t: (0, 0)),
            pl.BlockSpec((B, TC, Sp), lambda t: (0, t, 0)),
        ],
        out_specs=pl.BlockSpec((B, Sp), lambda t: (0, 0)),
        compiler_params=pltpu.CompilerParams(
            dimension_semantics=("arbitrary",)),
    )(lens, valid_f, skip_f, lp_ext)


def ctc_loss_from_alpha(alpha, label_lengths):
    s_len = 2 * label_lengths.astype(jnp.int32) + 1
    last = jnp.take_along_axis(alpha, (s_len - 1)[:, None], axis=1)[:, 0]
    last2 = jnp.take_along_axis(
        alpha, jnp.maximum(s_len - 2, 0)[:, None], axis=1)[:, 0]
    last2 = jnp.where(s_len >= 2, last2, NEG_INF)
    log_lik = jnp.logaddexp(last, last2)
    per_sample = -log_lik / jnp.maximum(label_lengths, 1).astype(jnp.float32)
    return jnp.mean(per_sample)


# --------------------------------------------------------------------------
# CAT_Model.forward equivalent (fn_loss='ctc' stand-in)
# --------------------------------------------------------------------------
def cat_model_forward(logits, labels, input_lengths, label_lengths, w, b,
                      blank=0):
    B, Lmax = labels.shape
    S = 2 * Lmax + 1
    # extended label sequence: blank, l1, blank, l2, ..., blank
    ext = jnp.full((B, S), blank, dtype=jnp.int32)
    ext = ext.at[:, 1::2].set(labels.astype(jnp.int32))

    # self.infer(logits, input_lengths) -> netout; log_softmax + label gather
    # fused in kernel 1 (only the needed (T, 2L+1) columns leave VMEM).
    lp_ext = infer_lp_ext(logits, w, b, ext)          # (B, Tp, Sp) f32
    lens_o = input_lengths.astype(jnp.int32)          # stand-in net: lens_o==T
    alpha = ctc_alpha(lp_ext, ext, lens_o, label_lengths, blank=blank)
    return ctc_loss_from_alpha(alpha, label_lengths)


if __name__ == "__main__":
    key = jax.random.PRNGKey(0)
    B, T, F, V, Lmax = 2, 16, 32, 8, 4
    k1, k2, k3 = jax.random.split(key, 3)

    # deterministic parameters for the stand-in "infer" net (Linear F->V)
    w = jax.random.normal(k2, (F, V), dtype=jnp.float32) * 0.1
    b = jnp.zeros((1, V), dtype=jnp.float32)

    # inputs
    logits = jax.random.normal(k1, (B, T, F), dtype=jnp.float32)
    labels = jax.random.randint(k3, (B, Lmax), 1, V).astype(jnp.int32)
    input_lengths = jnp.array([16, 12], dtype=jnp.int32)
    label_lengths = jnp.array([4, 3], dtype=jnp.int32)

    loss = jax.jit(cat_model_forward)(
        logits, labels, input_lengths, label_lengths, w, b)
    loss = jax.block_until_ready(loss)
    assert bool(jnp.isfinite(loss))
    assert 0.0 < float(loss) < 1e4   # NLL per label frame must be a sane positive
    print("KERNEL_OK")
</pallas_src>

<mosaic_0001>
module attributes {stable_mosaic.version = 11 : i64} {
  func.func @ctc_alpha_kernel(%arg0: i32, %arg1: memref<2x1xi32, #tpu.memory_space<vmem>>, %arg2: memref<2x128xf32, #tpu.memory_space<vmem>>, %arg3: memref<2x128xf32, #tpu.memory_space<vmem>>, %arg4: memref<2x16x128xf32, #tpu.memory_space<vmem>>, %arg5: memref<2x128xf32, #tpu.memory_space<vmem>>) attributes {dimension_semantics = [#tpu.dimension_semantics<arbitrary>], iteration_bounds = array<i64: 1>, scalar_prefetch = 0 : i64, scratch_operands = 0 : i64, tpu.core_type = #tpu.core_type<tc>, window_params = [{pipeline_mode = #tpu.pipeline_mode<synchronous>, transform_indices = @transform_0, window_bounds = array<i64: 2, 1>}, {pipeline_mode = #tpu.pipeline_mode<synchronous>, transform_indices = @transform_1, window_bounds = array<i64: 2, 128>}, {pipeline_mode = #tpu.pipeline_mode<synchronous>, transform_indices = @transform_2, window_bounds = array<i64: 2, 128>}, {transform_indices = @transform_3, window_bounds = array<i64: 2, 16, 128>}, {pipeline_mode = #tpu.pipeline_mode<synchronous>, transform_indices = @transform_4, window_bounds = array<i64: 2, 128>}]} {
    %0 = tpu.iota {dimensions = array<i32: 1>} : vector<2x128xi32>
    %c0 = arith.constant 0 : index
    %c0_0 = arith.constant 0 : index
    %1 = vector.load %arg2[%c0, %c0_0] : memref<2x128xf32, #tpu.memory_space<vmem>>, vector<2x128xf32>
    %cst = arith.constant 5.000000e-01 : f32
    %2 = vector.broadcast %cst : f32 to vector<2x128xf32>
    %3 = arith.cmpf ogt, %1, %2 : vector<2x128xf32>
    %c0_1 = arith.constant 0 : index
    %c0_2 = arith.constant 0 : index
    %4 = vector.load %arg3[%c0_1, %c0_2] : memref<2x128xf32, #tpu.memory_space<vmem>>, vector<2x128xf32>
    %cst_3 = arith.constant 5.000000e-01 : f32
    %5 = vector.broadcast %cst_3 : f32 to vector<2x128xf32>
    %6 = arith.cmpf ogt, %4, %5 : vector<2x128xf32>
    %c0_4 = arith.constant 0 : index
    %c0_5 = arith.constant 0 : index
    %7 = vector.load %arg1[%c0_4, %c0_5] : memref<2x1xi32, #tpu.memory_space<vmem>>, vector<2x1xi32>
    %c0_i32 = arith.constant 0 : i32
    %8 = arith.cmpi eq, %arg0, %c0_i32 : i32
    %9 = arith.extui %8 : i1 to i32
    %c0_i32_6 = arith.constant 0 : i32
    %10 = arith.cmpi ne, %9, %c0_i32_6 : i32
    scf.if %10 {
      %c0_188 = arith.constant 0 : index
      %c0_189 = arith.constant 0 : index
      %c0_190 = arith.constant 0 : index
      %621 = vector.load %arg4[%c0_188, %c0_189, %c0_190] : memref<2x16x128xf32, #tpu.memory_space<vmem>>, vector<2x1x128xf32>
      %622 = vector.shape_cast %621 : vector<2x1x128xf32> to vector<2x128xf32>
      %c1_i32_191 = arith.constant 1 : i32
      %623 = vector.broadcast %c1_i32_191 : i32 to vector<2x128xi32>
      %624 = arith.cmpi sle, %0, %623 : vector<2x128xi32>
      %625 = arith.andi %624, %3 : vector<2x128xi1>
      %cst_192 = arith.constant -1.000000e+30 : f32
      %626 = vector.broadcast %cst_192 : f32 to vector<2x128xf32>
      %627 = arith.select %625, %622, %626 : vector<2x128xi1>, vector<2x128xf32>
      %c0_193 = arith.constant 0 : index
      %c0_194 = arith.constant 0 : index
      %628 = vector.load %arg5[%c0_193, %c0_194] : memref<2x128xf32, #tpu.memory_space<vmem>>, vector<2x128xf32>
      tpu.vector_store %arg5[%c0_193, %c0_194], %627 {strides = array<i32>} : memref<2x128xf32, #tpu.memory_space<vmem>>, vector<2x128xf32>,
    } else {
    }
    %c0_7 = arith.constant 0 : index
    %c0_8 = arith.constant 0 : index
    %11 = vector.load %arg5[%c0_7, %c0_8] : memref<2x128xf32, #tpu.memory_space<vmem>>, vector<2x128xf32>
    %c16_i32 = arith.constant 16 : i32
    %12 = arith.muli %arg0, %c16_i32 : i32
    %c0_i32_9 = arith.constant 0 : i32
    %13 = arith.addi %12, %c0_i32_9 : i32
    %c0_10 = arith.constant 0 : index
    %c0_11 = arith.constant 0 : index
    %c0_12 = arith.constant 0 : index
    %14 = vector.load %arg4[%c0_10, %c0_11, %c0_12] : memref<2x16x128xf32, #tpu.memory_space<vmem>>, vector<2x1x128xf32>
    %15 = vector.shape_cast %14 : vector<2x1x128xf32> to vector<2x128xf32>
    %c1_i32 = arith.constant 1 : i32
    %16 = vector.broadcast %c1_i32 : i32 to vector<2x128xi32>
    %17 = arith.cmpi sge, %0, %16 : vector<2x128xi32>
    %c1_i32_13 = arith.constant 1 : i32
    %18 = tpu.dynamic_rotate %11 by %c1_i32_13 dim 1 : vector<2x128xf32>, i32 -> vector<2x128xf32>
    %cst_14 = arith.constant -1.000000e+30 : f32
    %19 = vector.broadcast %cst_14 : f32 to vector<2x128xf32>
    %20 = arith.select %17, %18, %19 : vector<2x128xi1>, vector<2x128xf32>
    %c2_i32 = arith.constant 2 : i32
    %21 = vector.broadcast %c2_i32 : i32 to vector<2x128xi32>
    %22 = arith.cmpi sge, %0, %21 : vector<2x128xi32>
    %23 = arith.andi %22, %6 : vector<2x128xi1>
    %c2_i32_15 = arith.constant 2 : i32
    %24 = tpu.dynamic_rotate %11 by %c2_i32_15 dim 1 : vector<2x128xf32>, i32 -> vector<2x128xf32>
    %cst_16 = arith.constant -1.000000e+30 : f32
    %25 = vector.broadcast %cst_16 : f32 to vector<2x128xf32>
    %26 = arith.select %23, %24, %25 : vector<2x128xi1>, vector<2x128xf32>
    %27 = arith.maximumf %11, %20 : vector<2x128xf32>
    %28 = arith.maximumf %27, %26 : vector<2x128xf32>
    %29 = arith.subf %11, %28 : vector<2x128xf32>
    %30 = math.exp %29 : vector<2x128xf32>
    %31 = arith.subf %20, %28 : vector<2x128xf32>
    %32 = math.exp %31 : vector<2x128xf32>
    %33 = arith.addf %30, %32 : vector<2x128xf32>
    %34 = arith.subf %26, %28 : vector<2x128xf32>
    %35 = math.exp %34 : vector<2x128xf32>
    %36 = arith.addf %33, %35 : vector<2x128xf32>
    %37 = math.log %36 : vector<2x128xf32>
    %38 = arith.addf %28, %37 : vector<2x128xf32>
    %39 = arith.addf %38, %15 : vector<2x128xf32>
    %cst_17 = arith.constant -1.000000e+30 : f32
    %40 = vector.broadcast %cst_17 : f32 to vector<2x128xf32>
    %41 = arith.select %3, %39, %40 : vector<2x128xi1>, vector<2x128xf32>
    %c1_i32_18 = arith.constant 1 : i32
    %42 = arith.cmpi sge, %13, %c1_i32_18 : i32
    %43 = vector.broadcast %13 : i32 to vector<2x1xi32>
    %44 = arith.cmpi slt, %43, %7 : vector<2x1xi32>
    %45 = vector.broadcast %42 : i1 to vector<2x1xi1>
    %46 = arith.andi %45, %44 : vector<2x1xi1>
    %47 = vector.shape_cast %46 : vector<2x1xi1> to vector<2x1xi1>
    %48 = vector.broadcast %47 : vector<2x1xi1> to vector<2x128xi1>
    %49 = arith.select %48, %41, %11 : vector<2x128xi1>, vector<2x128xf32>
    %c16_i32_19 = arith.constant 16 : i32
    %50 = arith.muli %arg0, %c16_i32_19 : i32
    %c1_i32_20 = arith.constant 1 : i32
    %51 = arith.addi %50, %c1_i32_20 : i32
    %c0_21 = arith.constant 0 : index
    %c1 = arith.constant 1 : index
    %c0_22 = arith.constant 0 : index
    %52 = vector.load %arg4[%c0_21, %c1, %c0_22] : memref<2x16x128xf32, #tpu.memory_space<vmem>>, vector<2x1x128xf32>
    %53 = vector.shape_cast %52 : vector<2x1x128xf32> to vector<2x128xf32>
    %c1_i32_23 = arith.constant 1 : i32
    %54 = vector.broadcast %c1_i32_23 : i32 to vector<2x128xi32>
    %55 = arith.cmpi sge, %0, %54 : vector<2x128xi32>
    %c1_i32_24 = arith.constant 1 : i32
    %56 = tpu.dynamic_rotate %49 by %c1_i32_24 dim 1 : vector<2x128xf32>, i32 -> vector<2x128xf32>
    %cst_25 = arith.constant -1.000000e+30 : f32
    %57 = vector.broadcast %cst_25 : f32 to vector<2x128xf32>
    %58 = arith.select %55, %56, %57 : vector<2x128xi1>, vector<2x128xf32>
    %c2_i32_26 = arith.constant 2 : i32
    %59 = vector.broadcast %c2_i32_26 : i32 to vector<2x128xi32>
    %60 = arith.cmpi sge, %0, %59 : vector<2x128xi32>
    %61 = arith.andi %60, %6 : vector<2x128xi1>
    %c2_i32_27 = arith.constant 2 : i32
    %62 = tpu.dynamic_rotate %49 by %c2_i32_27 dim 1 : vector<2x128xf32>, i32 -> vector<2x128xf32>
    %cst_28 = arith.constant -1.000000e+30 : f32
    %63 = vector.broadcast %cst_28 : f32 to vector<2x128xf32>
    %64 = arith.select %61, %62, %63 : vector<2x128xi1>, vector<2x128xf32>
    %65 = arith.maximumf %49, %58 : vector<2x128xf32>
    %66 = arith.maximumf %65, %64 : vector<2x128xf32>
    %67 = arith.subf %49, %66 : vector<2x128xf32>
    %68 = math.exp %67 : vector<2x128xf32>
    %69 = arith.subf %58, %66 : vector<2x128xf32>
    %70 = math.exp %69 : vector<2x128xf32>
    %71 = arith.addf %68, %70 : vector<2x128xf32>
    %72 = arith.subf %64, %66 : vector<2x128xf32>
    %73 = math.exp %72 : vector<2x128xf32>
    %74 = arith.addf %71, %73 : vector<2x128xf32>
    %75 = math.log %74 : vector<2x128xf32>
    %76 = arith.addf %66, %75 : vector<2x128xf32>
    %77 = arith.addf %76, %53 : vector<2x128xf32>
    %cst_29 = arith.constant -1.000000e+30 : f32
    %78 = vector.broadcast %cst_29 : f32 to vector<2x128xf32>
    %79 = arith.select %3, %77, %78 : vector<2x128xi1>, vector<2x128xf32>
    %c1_i32_30 = arith.constant 1 : i32
    %80 = arith.cmpi sge, %51, %c1_i32_30 : i32
    %81 = vector.broadcast %51 : i32 to vector<2x1xi32>
    %82 = arith.cmpi slt, %81, %7 : vector<2x1xi32>
    %83 = vector.broadcast %80 : i1 to vector<2x1xi1>
    %84 = arith.andi %83, %82 : vector<2x1xi1>
    %85 = vector.shape_cast %84 : vector<2x1xi1> to vector<2x1xi1>
    %86 = vector.broadcast %85 : vector<2x1xi1> to vector<2x128xi1>
    %87 = arith.select %86, %79, %49 : vector<2x128xi1>, vector<2x128xf32>
    %c16_i32_31 = arith.constant 16 : i32
    %88 = arith.muli %arg0, %c16_i32_31 : i32
    %c2_i32_32 = arith.constant 2 : i32
    %89 = arith.addi %88, %c2_i32_32 : i32
    %c0_33 = arith.constant 0 : index
    %c2 = arith.constant 2 : index
    %c0_34 = arith.constant 0 : index
    %90 = vector.load %arg4[%c0_33, %c2, %c0_34] : memref<2x16x128xf32, #tpu.memory_space<vmem>>, vector<2x1x128xf32>
    %91 = vector.shape_cast %90 : vector<2x1x128xf32> to vector<2x128xf32>
    %c1_i32_35 = arith.constant 1 : i32
    %92 = vector.broadcast %c1_i32_35 : i32 to vector<2x128xi32>
    %93 = arith.cmpi sge, %0, %92 : vector<2x128xi32>
    %c1_i32_36 = arith.constant 1 : i32
    %94 = tpu.dynamic_rotate %87 by %c1_i32_36 dim 1 : vector<2x128xf32>, i32 -> vector<2x128xf32>
    %cst_37 = arith.constant -1.000000e+30 : f32
    %95 = vector.broadcast %cst_37 : f32 to vector<2x128xf32>
    %96 = arith.select %93, %94, %95 : vector<2x128xi1>, vector<2x128xf32>
    %c2_i32_38 = arith.constant 2 : i32
    %97 = vector.broadcast %c2_i32_38 : i32 to vector<2x128xi32>
    %98 = arith.cmpi sge, %0, %97 : vector<2x128xi32>
    %99 = arith.andi %98, %6 : vector<2x128xi1>
    %c2_i32_39 = arith.constant 2 : i32
    %100 = tpu.dynamic_rotate %87 by %c2_i32_39 dim 1 : vector<2x128xf32>, i32 -> vector<2x128xf32>
    %cst_40 = arith.constant -1.000000e+30 : f32
    %101 = vector.broadcast %cst_40 : f32 to vector<2x128xf32>
    %102 = arith.select %99, %100, %101 : vector<2x128xi1>, vector<2x128xf32>
    %103 = arith.maximumf %87, %96 : vector<2x128xf32>
    %104 = arith.maximumf %103, %102 : vector<2x128xf32>
    %105 = arith.subf %87, %104 : vector<2x128xf32>
    %106 = math.exp %105 : vector<2x128xf32>
    %107 = arith.subf %96, %104 : vector<2x128xf32>
    %108 = math.exp %107 : vector<2x128xf32>
    %109 = arith.addf %106, %108 : vector<2x128xf32>
    %110 = arith.subf %102, %104 : vector<2x128xf32>
    %111 = math.exp %110 : vector<2x128xf32>
    %112 = arith.addf %109, %111 : vector<2x128xf32>
    %113 = math.log %112 : vector<2x128xf32>
    %114 = arith.addf %104, %113 : vector<2x128xf32>
    %115 = arith.addf %114, %91 : vector<2x128xf32>
    %cst_41 = arith.constant -1.000000e+30 : f32
    %116 = vector.broadcast %cst_41 : f32 to vector<2x128xf32>
    %117 = arith.select %3, %115, %116 : vector<2x128xi1>, vector<2x128xf32>
    %c1_i32_42 = arith.constant 1 : i32
    %118 = arith.cmpi sge, %89, %c1_i32_42 : i32
    %119 = vector.broadcast %89 : i32 to vector<2x1xi32>
    %120 = arith.cmpi slt, %119, %7 : vector<2x1xi32>
    %121 = vector.broadcast %118 : i1 to vector<2x1xi1>
    %122 = arith.andi %121, %120 : vector<2x1xi1>
    %123 = vector.shape_cast %122 : vector<2x1xi1> to vector<2x1xi1>
    %124 = vector.broadcast %123 : vector<2x1xi1> to vector<2x128xi1>
    %125 = arith.select %124, %117, %87 : vector<2x128xi1>, vector<2x128xf32>
    %c16_i32_43 = arith.constant 16 : i32
    %126 = arith.muli %arg0, %c16_i32_43 : i32
    %c3_i32 = arith.constant 3 : i32
    %127 = arith.addi %126, %c3_i32 : i32
    %c0_44 = arith.constant 0 : index
    %c3 = arith.constant 3 : index
    %c0_45 = arith.constant 0 : index
    %128 = vector.load %arg4[%c0_44, %c3, %c0_45] : memref<2x16x128xf32, #tpu.memory_space<vmem>>, vector<2x1x128xf32>
    %129 = vector.shape_cast %128 : vector<2x1x128xf32> to vector<2x128xf32>
    %c1_i32_46 = arith.constant 1 : i32
    %130 = vector.broadcast %c1_i32_46 : i32 to vector<2x128xi32>
    %131 = arith.cmpi sge, %0, %130 : vector<2x128xi32>
    %c1_i32_47 = arith.constant 1 : i32
    %132 = tpu.dynamic_rotate %125 by %c1_i32_47 dim 1 : vector<2x128xf32>, i32 -> vector<2x128xf32>
    %cst_48 = arith.constant -1.000000e+30 : f32
    %133 = vector.broadcast %cst_48 : f32 to vector<2x128xf32>
    %134 = arith.select %131, %132, %133 : vector<2x128xi1>, vector<2x128xf32>
    %c2_i32_49 = arith.constant 2 : i32
    %135 = vector.broadcast %c2_i32_49 : i32 to vector<2x128xi32>
    %136 = arith.cmpi sge, %0, %135 : vector<2x128xi32>
    %137 = arith.andi %136, %6 : vector<2x128xi1>
    %c2_i32_50 = arith.constant 2 : i32
    %138 = tpu.dynamic_rotate %125 by %c2_i32_50 dim 1 : vector<2x128xf32>, i32 -> vector<2x128xf32>
    %cst_51 = arith.constant -1.000000e+30 : f32
    %139 = vector.broadcast %cst_51 : f32 to vector<2x128xf32>
    %140 = arith.select %137, %138, %139 : vector<2x128xi1>, vector<2x128xf32>
    %141 = arith.maximumf %125, %134 : vector<2x128xf32>
    %142 = arith.maximumf %141, %140 : vector<2x128xf32>
    %143 = arith.subf %125, %142 : vector<2x128xf32>
    %144 = math.exp %143 : vector<2x128xf32>
    %145 = arith.subf %134, %142 : vector<2x128xf32>
    %146 = math.exp %145 : vector<2x128xf32>
    %147 = arith.addf %144, %146 : vector<2x128xf32>
    %148 = arith.subf %140, %142 : vector<2x128xf32>
    %149 = math.exp %148 : vector<2x128xf32>
    %150 = arith.addf %147, %149 : vector<2x128xf32>
    %151 = math.log %150 : vector<2x128xf32>
    %152 = arith.addf %142, %151 : vector<2x128xf32>
    %153 = arith.addf %152, %129 : vector<2x128xf32>
    %cst_52 = arith.constant -1.000000e+30 : f32
    %154 = vector.broadcast %cst_52 : f32 to vector<2x128xf32>
    %155 = arith.select %3, %153, %154 : vector<2x128xi1>, vector<2x128xf32>
    %c1_i32_53 = arith.constant 1 : i32
    %156 = arith.cmpi sge, %127, %c1_i32_53 : i32
    %157 = vector.broadcast %127 : i32 to vector<2x1xi32>
    %158 = arith.cmpi slt, %157, %7 : vector<2x1xi32>
    %159 = vector.broadcast %156 : i1 to vector<2x1xi1>
    %160 = arith.andi %159, %158 : vector<2x1xi1>
    %161 = vector.shape_cast %160 : vector<2x1xi1> to vector<2x1xi1>
    %162 = vector.broadcast %161 : vector<2x1xi1> to vector<2x128xi1>
    %163 = arith.select %162, %155, %125 : vector<2x128xi1>, vector<2x128xf32>
    %c16_i32_54 = arith.constant 16 : i32
    %164 = arith.muli %arg0, %c16_i32_54 : i32
    %c4_i32 = arith.constant 4 : i32
    %165 = arith.addi %164, %c4_i32 : i32
    %c0_55 = arith.constant 0 : index
    %c4 = arith.constant 4 : index
    %c0_56 = arith.constant 0 : index
    %166 = vector.load %arg4[%c0_55, %c4, %c0_56] : memref<2x16x128xf32, #tpu.memory_space<vmem>>, vector<2x1x128xf32>
    %167 = vector.shape_cast %166 : vector<2x1x128xf32> to vector<2x128xf32>
    %c1_i32_57 = arith.constant 1 : i32
    %168 = vector.broadcast %c1_i32_57 : i32 to vector<2x128xi32>
    %169 = arith.cmpi sge, %0, %168 : vector<2x128xi32>
    %c1_i32_58 = arith.constant 1 : i32
    %170 = tpu.dynamic_rotate %163 by %c1_i32_58 dim 1 : vector<2x128xf32>, i32 -> vector<2x128xf32>
    %cst_59 = arith.constant -1.000000e+30 : f32
    %171 = vector.broadcast %cst_59 : f32 to vector<2x128xf32>
    %172 = arith.select %169, %170, %171 : vector<2x128xi1>, vector<2x128xf32>
    %c2_i32_60 = arith.constant 2 : i32
    %173 = vector.broadcast %c2_i32_60 : i32 to vector<2x128xi32>
    %174 = arith.cmpi sge, %0, %173 : vector<2x128xi32>
    %175 = arith.andi %174, %6 : vector<2x128xi1>
    %c2_i32_61 = arith.constant 2 : i32
    %176 = tpu.dynamic_rotate %163 by %c2_i32_61 dim 1 : vector<2x128xf32>, i32 -> vector<2x128xf32>
    %cst_62 = arith.constant -1.000000e+30 : f32
    %177 = vector.broadcast %cst_62 : f32 to vector<2x128xf32>
    %178 = arith.select %175, %176, %177 : vector<2x128xi1>, vector<2x128xf32>
    %179 = arith.maximumf %163, %172 : vector<2x128xf32>
    %180 = arith.maximumf %179, %178 : vector<2x128xf32>
    %181 = arith.subf %163, %180 : vector<2x128xf32>
    %182 = math.exp %181 : vector<2x128xf32>
    %183 = arith.subf %172, %180 : vector<2x128xf32>
    %184 = math.exp %183 : vector<2x128xf32>
    %185 = arith.addf %182, %184 : vector<2x128xf32>
    %186 = arith.subf %178, %180 : vector<2x128xf32>
    %187 = math.exp %186 : vector<2x128xf32>
    %188 = arith.addf %185, %187 : vector<2x128xf32>
    %189 = math.log %188 : vector<2x128xf32>
    %190 = arith.addf %180, %189 : vector<2x128xf32>
    %191 = arith.addf %190, %167 : vector<2x128xf32>
    %cst_63 = arith.constant -1.000000e+30 : f32
    %192 = vector.broadcast %cst_63 : f32 to vector<2x128xf32>
    %193 = arith.select %3, %191, %192 : vector<2x128xi1>, vector<2x128xf32>
    %c1_i32_64 = arith.constant 1 : i32
    %194 = arith.cmpi sge, %165, %c1_i32_64 : i32
    %195 = vector.broadcast %165 : i32 to vector<2x1xi32>
    %196 = arith.cmpi slt, %195, %7 : vector<2x1xi32>
    %197 = vector.broadcast %194 : i1 to vector<2x1xi1>
    %198 = arith.andi %197, %196 : vector<2x1xi1>
    %199 = vector.shape_cast %198 : vector<2x1xi1> to vector<2x1xi1>
    %200 = vector.broadcast %199 : vector<2x1xi1> to vector<2x128xi1>
    %201 = arith.select %200, %193, %163 : vector<2x128xi1>, vector<2x128xf32>
    %c16_i32_65 = arith.constant 16 : i32
    %202 = arith.muli %arg0, %c16_i32_65 : i32
    %c5_i32 = arith.constant 5 : i32
    %203 = arith.addi %202, %c5_i32 : i32
    %c0_66 = arith.constant 0 : index
    %c5 = arith.constant 5 : index
    %c0_67 = arith.constant 0 : index
    %204 = vector.load %arg4[%c0_66, %c5, %c0_67] : memref<2x16x128xf32, #tpu.memory_space<vmem>>, vector<2x1x128xf32>
    %205 = vector.shape_cast %204 : vector<2x1x128xf32> to vector<2x128xf32>
    %c1_i32_68 = arith.constant 1 : i32
    %206 = vector.broadcast %c1_i32_68 : i32 to vector<2x128xi32>
    %207 = arith.cmpi sge, %0, %206 : vector<2x128xi32>
    %c1_i32_69 = arith.constant 1 : i32
    %208 = tpu.dynamic_rotate %201 by %c1_i32_69 dim 1 : vector<2x128xf32>, i32 -> vector<2x128xf32>
    %cst_70 = arith.constant -1.000000e+30 : f32
    %209 = vector.broadcast %cst_70 : f32 to vector<2x128xf32>
    %210 = arith.select %207, %208, %209 : vector<2x128xi1>, vector<2x128xf32>
    %c2_i32_71 = arith.constant 2 : i32
    %211 = vector.broadcast %c2_i32_71 : i32 to vector<2x128xi32>
    %212 = arith.cmpi sge, %0, %211 : vector<2x128xi32>
    %213 = arith.andi %212, %6 : vector<2x128xi1>
    %c2_i32_72 = arith.constant 2 : i32
    %214 = tpu.dynamic_rotate %201 by %c2_i32_72 dim 1 : vector<2x128xf32>, i32 -> vector<2x128xf32>
    %cst_73 = arith.constant -1.000000e+30 : f32
    %215 = vector.broadcast %cst_73 : f32 to vector<2x128xf32>
    %216 = arith.select %213, %214, %215 : vector<2x128xi1>, vector<2x128xf32>
    %217 = arith.maximumf %201, %210 : vector<2x128xf32>
    %218 = arith.maximumf %217, %216 : vector<2x128xf32>
    %219 = arith.subf %201, %218 : vector<2x128xf32>
    %220 = math.exp %219 : vector<2x128xf32>
    %221 = arith.subf %210, %218 : vector<2x128xf32>
    %222 = math.exp %221 : vector<2x128xf32>
    %223 = arith.addf %220, %222 : vector<2x128xf32>
    %224 = arith.subf %216, %218 : vector<2x128xf32>
    %225 = math.exp %224 : vector<2x128xf32>
    %226 = arith.addf %223, %225 : vector<2x128xf32>
    %227 = math.log %226 : vector<2x128xf32>
    %228 = arith.addf %218, %227 : vector<2x128xf32>
    %229 = arith.addf %228, %205 : vector<2x128xf32>
    %cst_74 = arith.constant -1.000000e+30 : f32
    %230 = vector.broadcast %cst_74 : f32 to vector<2x128xf32>
    %231 = arith.select %3, %229, %230 : vector<2x128xi1>, vector<2x128xf32>
    %c1_i32_75 = arith.constant 1 : i32
    %232 = arith.cmpi sge, %203, %c1_i32_75 : i32
    %233 = vector.broadcast %203 : i32 to vector<2x1xi32>
    %234 = arith.cmpi slt, %233, %7 : vector<2x1xi32>
    %235 = vector.broadcast %232 : i1 to vector<2x1xi1>
    %236 = arith.andi %235, %234 : vector<2x1xi1>
    %237 = vector.shape_cast %236 : vector<2x1xi1> to vector<2x1xi1>
    %238 = vector.broadcast %237 : vector<2x1xi1> to vector<2x128xi1>
    %239 = arith.select %238, %231, %201 : vector<2x128xi1>, vector<2x128xf32>
    %c16_i32_76 = arith.constant 16 : i32
    %240 = arith.muli %arg0, %c16_i32_76 : i32
    %c6_i32 = arith.constant 6 : i32
    %241 = arith.addi %240, %c6_i32 : i32
    %c0_77 = arith.constant 0 : index
    %c6 = arith.constant 6 : index
    %c0_78 = arith.constant 0 : index
    %242 = vector.load %arg4[%c0_77, %c6, %c0_78] : memref<2x16x128xf32, #tpu.memory_space<vmem>>, vector<2x1x128xf32>
    %243 = vector.shape_cast %242 : vector<2x1x128xf32> to vector<2x128xf32>
    %c1_i32_79 = arith.constant 1 : i32
    %244 = vector.broadcast %c1_i32_79 : i32 to vector<2x128xi32>
    %245 = arith.cmpi sge, %0, %244 : vector<2x128xi32>
    %c1_i32_80 = arith.constant 1 : i32
    %246 = tpu.dynamic_rotate %239 by %c1_i32_80 dim 1 : vector<2x128xf32>, i32 -> vector<2x128xf32>
    %cst_81 = arith.constant -1.000000e+30 : f32
    %247 = vector.broadcast %cst_81 : f32 to vector<2x128xf32>
    %248 = arith.select %245, %246, %247 : vector<2x128xi1>, vector<2x128xf32>
    %c2_i32_82 = arith.constant 2 : i32
    %249 = vector.broadcast %c2_i32_82 : i32 to vector<2x128xi32>
    %250 = arith.cmpi sge, %0, %249 : vector<2x128xi32>
    %251 = arith.andi %250, %6 : vector<2x128xi1>
    %c2_i32_83 = arith.constant 2 : i32
    %252 = tpu.dynamic_rotate %239 by %c2_i32_83 dim 1 : vector<2x128xf32>, i32 -> vector<2x128xf32>
    %cst_84 = arith.constant -1.000000e+30 : f32
    %253 = vector.broadcast %cst_84 : f32 to vector<2x128xf32>
    %254 = arith.select %251, %252, %253 : vector<2x128xi1>, vector<2x128xf32>
    %255 = arith.maximumf %239, %248 : vector<2x128xf32>
    %256 = arith.maximumf %255, %254 : vector<2x128xf32>
    %257 = arith.subf %239, %256 : vector<2x128xf32>
    %258 = math.exp %257 : vector<2x128xf32>
    %259 = arith.subf %248, %256 : vector<2x128xf32>
    %260 = math.exp %259 : vector<2x128xf32>
    %261 = arith.addf %258, %260 : vector<2x128xf32>
    %262 = arith.subf %254, %256 : vector<2x128xf32>
    %263 = math.exp %262 : vector<2x128xf32>
    %264 = arith.addf %261, %263 : vector<2x128xf32>
    %265 = math.log %264 : vector<2x128xf32>
    %266 = arith.addf %256, %265 : vector<2x128xf32>
    %267 = arith.addf %266, %243 : vector<2x128xf32>
    %cst_85 = arith.constant -1.000000e+30 : f32
    %268 = vector.broadcast %cst_85 : f32 to vector<2x128xf32>
    %269 = arith.select %3, %267, %268 : vector<2x128xi1>, vector<2x128xf32>
    %c1_i32_86 = arith.constant 1 : i32
    %270 = arith.cmpi sge, %241, %c1_i32_86 : i32
    %271 = vector.broadcast %241 : i32 to vector<2x1xi32>
    %272 = arith.cmpi slt, %271, %7 : vector<2x1xi32>
    %273 = vector.broadcast %270 : i1 to vector<2x1xi1>
    %274 = arith.andi %273, %272 : vector<2x1xi1>
    %275 = vector.shape_cast %274 : vector<2x1xi1> to vector<2x1xi1>
    %276 = vector.broadcast %275 : vector<2x1xi1> to vector<2x128xi1>
    %277 = arith.select %276, %269, %239 : vector<2x128xi1>, vector<2x128xf32>
    %c16_i32_87 = arith.constant 16 : i32
    %278 = arith.muli %arg0, %c16_i32_87 : i32
    %c7_i32 = arith.constant 7 : i32
    %279 = arith.addi %278, %c7_i32 : i32
    %c0_88 = arith.constant 0 : index
    %c7 = arith.constant 7 : index
    %c0_89 = arith.constant 0 : index
    %280 = vector.load %arg4[%c0_88, %c7, %c0_89] : memref<2x16x128xf32, #tpu.memory_space<vmem>>, vector<2x1x128xf32>
    %281 = vector.shape_cast %280 : vector<2x1x128xf32> to vector<2x128xf32>
    %c1_i32_90 = arith.constant 1 : i32
    %282 = vector.broadcast %c1_i32_90 : i32 to vector<2x128xi32>
    %283 = arith.cmpi sge, %0, %282 : vector<2x128xi32>
    %c1_i32_91 = arith.constant 1 : i32
    %284 = tpu.dynamic_rotate %277 by %c1_i32_91 dim 1 : vector<2x128xf32>, i32 -> vector<2x128xf32>
    %cst_92 = arith.constant -1.000000e+30 : f32
    %285 = vector.broadcast %cst_92 : f32 to vector<2x128xf32>
    %286 = arith.select %283, %284, %285 : vector<2x128xi1>, vector<2x128xf32>
    %c2_i32_93 = arith.constant 2 : i32
    %287 = vector.broadcast %c2_i32_93 : i32 to vector<2x128xi32>
    %288 = arith.cmpi sge, %0, %287 : vector<2x128xi32>
    %289 = arith.andi %288, %6 : vector<2x128xi1>
    %c2_i32_94 = arith.constant 2 : i32
    %290 = tpu.dynamic_rotate %277 by %c2_i32_94 dim 1 : vector<2x128xf32>, i32 -> vector<2x128xf32>
    %cst_95 = arith.constant -1.000000e+30 : f32
    %291 = vector.broadcast %cst_95 : f32 to vector<2x128xf32>
    %292 = arith.select %289, %290, %291 : vector<2x128xi1>, vector<2x128xf32>
    %293 = arith.maximumf %277, %286 : vector<2x128xf32>
    %294 = arith.maximumf %293, %292 : vector<2x128xf32>
    %295 = arith.subf %277, %294 : vector<2x128xf32>
    %296 = math.exp %295 : vector<2x128xf32>
    %297 = arith.subf %286, %294 : vector<2x128xf32>
    %298 = math.exp %297 : vector<2x128xf32>
    %299 = arith.addf %296, %298 : vector<2x128xf32>
    %300 = arith.subf %292, %294 : vector<2x128xf32>
    %301 = math.exp %300 : vector<2x128xf32>
    %302 = arith.addf %299, %301 : vector<2x128xf32>
    %303 = math.log %302 : vector<2x128xf32>
    %304 = arith.addf %294, %303 : vector<2x128xf32>
    %305 = arith.addf %304, %281 : vector<2x128xf32>
    %cst_96 = arith.constant -1.000000e+30 : f32
    %306 = vector.broadcast %cst_96 : f32 to vector<2x128xf32>
    %307 = arith.select %3, %305, %306 : vector<2x128xi1>, vector<2x128xf32>
    %c1_i32_97 = arith.constant 1 : i32
    %308 = arith.cmpi sge, %279, %c1_i32_97 : i32
    %309 = vector.broadcast %279 : i32 to vector<2x1xi32>
    %310 = arith.cmpi slt, %309, %7 : vector<2x1xi32>
    %311 = vector.broadcast %308 : i1 to vector<2x1xi1>
    %312 = arith.andi %311, %310 : vector<2x1xi1>
    %313 = vector.shape_cast %312 : vector<2x1xi1> to vector<2x1xi1>
    %314 = vector.broadcast %313 : vector<2x1xi1> to vector<2x128xi1>
    %315 = arith.select %314, %307, %277 : vector<2x128xi1>, vector<2x128xf32>
    %c16_i32_98 = arith.constant 16 : i32
    %316 = arith.muli %arg0, %c16_i32_98 : i32
    %c8_i32 = arith.constant 8 : i32
    %317 = arith.addi %316, %c8_i32 : i32
    %c0_99 = arith.constant 0 : index
    %c8 = arith.constant 8 : index
    %c0_100 = arith.constant 0 : index
    %318 = vector.load %arg4[%c0_99, %c8, %c0_100] : memref<2x16x128xf32, #tpu.memory_space<vmem>>, vector<2x1x128xf32>
    %319 = vector.shape_cast %318 : vector<2x1x128xf32> to vector<2x128xf32>
    %c1_i32_101 = arith.constant 1 : i32
    %320 = vector.broadcast %c1_i32_101 : i32 to vector<2x128xi32>
    %321 = arith.cmpi sge, %0, %320 : vector<2x128xi32>
    %c1_i32_102 = arith.constant 1 : i32
    %322 = tpu.dynamic_rotate %315 by %c1_i32_102 dim 1 : vector<2x128xf32>, i32 -> vector<2x128xf32>
    %cst_103 = arith.constant -1.000000e+30 : f32
    %323 = vector.broadcast %cst_103 : f32 to vector<2x128xf32>
    %324 = arith.select %321, %322, %323 : vector<2x128xi1>, vector<2x128xf32>
    %c2_i32_104 = arith.constant 2 : i32
    %325 = vector.broadcast %c2_i32_104 : i32 to vector<2x128xi32>
    %326 = arith.cmpi sge, %0, %325 : vector<2x128xi32>
    %327 = arith.andi %326, %6 : vector<2x128xi1>
    %c2_i32_105 = arith.constant 2 : i32
    %328 = tpu.dynamic_rotate %315 by %c2_i32_105 dim 1 : vector<2x128xf32>, i32 -> vector<2x128xf32>
    %cst_106 = arith.constant -1.000000e+30 : f32
    %329 = vector.broadcast %cst_106 : f32 to vector<2x128xf32>
    %330 = arith.select %327, %328, %329 : vector<2x128xi1>, vector<2x128xf32>
    %331 = arith.maximumf %315, %324 : vector<2x128xf32>
    %332 = arith.maximumf %331, %330 : vector<2x128xf32>
    %333 = arith.subf %315, %332 : vector<2x128xf32>
    %334 = math.exp %333 : vector<2x128xf32>
    %335 = arith.subf %324, %332 : vector<2x128xf32>
    %336 = math.exp %335 : vector<2x128xf32>
    %337 = arith.addf %334, %336 : vector<2x128xf32>
    %338 = arith.subf %330, %332 : vector<2x128xf32>
    %339 = math.exp %338 : vector<2x128xf32>
    %340 = arith.addf %337, %339 : vector<2x128xf32>
    %341 = math.log %340 : vector<2x128xf32>
    %342 = arith.addf %332, %341 : vector<2x128xf32>
    %343 = arith.addf %342, %319 : vector<2x128xf32>
    %cst_107 = arith.constant -1.000000e+30 : f32
    %344 = vector.broadcast %cst_107 : f32 to vector<2x128xf32>
    %345 = arith.select %3, %343, %344 : vector<2x128xi1>, vector<2x128xf32>
    %c1_i32_108 = arith.constant 1 : i32
    %346 = arith.cmpi sge, %317, %c1_i32_108 : i32
    %347 = vector.broadcast %317 : i32 to vector<2x1xi32>
    %348 = arith.cmpi slt, %347, %7 : vector<2x1xi32>
    %349 = vector.broadcast %346 : i1 to vector<2x1xi1>
    %350 = arith.andi %349, %348 : vector<2x1xi1>
    %351 = vector.shape_cast %350 : vector<2x1xi1> to vector<2x1xi1>
    %352 = vector.broadcast %351 : vector<2x1xi1> to vector<2x128xi1>
    %353 = arith.select %352, %345, %315 : vector<2x128xi1>, vector<2x128xf32>
    %c16_i32_109 = arith.constant 16 : i32
    %354 = arith.muli %arg0, %c16_i32_109 : i32
    %c9_i32 = arith.constant 9 : i32
    %355 = arith.addi %354, %c9_i32 : i32
    %c0_110 = arith.constant 0 : index
    %c9 = arith.constant 9 : index
    %c0_111 = arith.constant 0 : index
    %356 = vector.load %arg4[%c0_110, %c9, %c0_111] : memref<2x16x128xf32, #tpu.memory_space<vmem>>, vector<2x1x128xf32>
    %357 = vector.shape_cast %356 : vector<2x1x128xf32> to vector<2x128xf32>
    %c1_i32_112 = arith.constant 1 : i32
    %358 = vector.broadcast %c1_i32_112 : i32 to vector<2x128xi32>
    %359 = arith.cmpi sge, %0, %358 : vector<2x128xi32>
    %c1_i32_113 = arith.constant 1 : i32
    %360 = tpu.dynamic_rotate %353 by %c1_i32_113 dim 1 : vector<2x128xf32>, i32 -> vector<2x128xf32>
    %cst_114 = arith.constant -1.000000e+30 : f32
    %361 = vector.broadcast %cst_114 : f32 to vector<2x128xf32>
    %362 = arith.select %359, %360, %361 : vector<2x128xi1>, vector<2x128xf32>
    %c2_i32_115 = arith.constant 2 : i32
    %363 = vector.broadcast %c2_i32_115 : i32 to vector<2x128xi32>
    %364 = arith.cmpi sge, %0, %363 : vector<2x128xi32>
    %365 = arith.andi %364, %6 : vector<2x128xi1>
    %c2_i32_116 = arith.constant 2 : i32
    %366 = tpu.dynamic_rotate %353 by %c2_i32_116 dim 1 : vector<2x128xf32>, i32 -> vector<2x128xf32>
    %cst_117 = arith.constant -1.000000e+30 : f32
    %367 = vector.broadcast %cst_117 : f32 to vector<2x128xf32>
    %368 = arith.select %365, %366, %367 : vector<2x128xi1>, vector<2x128xf32>
    %369 = arith.maximumf %353, %362 : vector<2x128xf32>
    %370 = arith.maximumf %369, %368 : vector<2x128xf32>
    %371 = arith.subf %353, %370 : vector<2x128xf32>
    %372 = math.exp %371 : vector<2x128xf32>
    %373 = arith.subf %362, %370 : vector<2x128xf32>
    %374 = math.exp %373 : vector<2x128xf32>
    %375 = arith.addf %372, %374 : vector<2x128xf32>
    %376 = arith.subf %368, %370 : vector<2x128xf32>
    %377 = math.exp %376 : vector<2x128xf32>
    %378 = arith.addf %375, %377 : vector<2x128xf32>
    %379 = math.log %378 : vector<2x128xf32>
    %380 = arith.addf %370, %379 : vector<2x128xf32>
    %381 = arith.addf %380, %357 : vector<2x128xf32>
    %cst_118 = arith.constant -1.000000e+30 : f32
    %382 = vector.broadcast %cst_118 : f32 to vector<2x128xf32>
    %383 = arith.select %3, %381, %382 : vector<2x128xi1>, vector<2x128xf32>
    %c1_i32_119 = arith.constant 1 : i32
    %384 = arith.cmpi sge, %355, %c1_i32_119 : i32
    %385 = vector.broadcast %355 : i32 to vector<2x1xi32>
    %386 = arith.cmpi slt, %385, %7 : vector<2x1xi32>
    %387 = vector.broadcast %384 : i1 to vector<2x1xi1>
    %388 = arith.andi %387, %386 : vector<2x1xi1>
    %389 = vector.shape_cast %388 : vector<2x1xi1> to vector<2x1xi1>
    %390 = vector.broadcast %389 : vector<2x1xi1> to vector<2x128xi1>
    %391 = arith.select %390, %383, %353 : vector<2x128xi1>, vector<2x128xf32>
    %c16_i32_120 = arith.constant 16 : i32
    %392 = arith.muli %arg0, %c16_i32_120 : i32
    %c10_i32 = arith.constant 10 : i32
    %393 = arith.addi %392, %c10_i32 : i32
    %c0_121 = arith.constant 0 : index
    %c10 = arith.constant 10 : index
    %c0_122 = arith.constant 0 : index
    %394 = vector.load %arg4[%c0_121, %c10, %c0_122] : memref<2x16x128xf32, #tpu.memory_space<vmem>>, vector<2x1x128xf32>
    %395 = vector.shape_cast %394 : vector<2x1x128xf32> to vector<2x128xf32>
    %c1_i32_123 = arith.constant 1 : i32
    %396 = vector.broadcast %c1_i32_123 : i32 to vector<2x128xi32>
    %397 = arith.cmpi sge, %0, %396 : vector<2x128xi32>
    %c1_i32_124 = arith.constant 1 : i32
    %398 = tpu.dynamic_rotate %391 by %c1_i32_124 dim 1 : vector<2x128xf32>, i32 -> vector<2x128xf32>
    %cst_125 = arith.constant -1.000000e+30 : f32
    %399 = vector.broadcast %cst_125 : f32 to vector<2x128xf32>
    %400 = arith.select %397, %398, %399 : vector<2x128xi1>, vector<2x128xf32>
    %c2_i32_126 = arith.constant 2 : i32
    %401 = vector.broadcast %c2_i32_126 : i32 to vector<2x128xi32>
    %402 = arith.cmpi sge, %0, %401 : vector<2x128xi32>
    %403 = arith.andi %402, %6 : vector<2x128xi1>
    %c2_i32_127 = arith.constant 2 : i32
    %404 = tpu.dynamic_rotate %391 by %c2_i32_127 dim 1 : vector<2x128xf32>, i32 -> vector<2x128xf32>
    %cst_128 = arith.constant -1.000000e+30 : f32
    %405 = vector.broadcast %cst_128 : f32 to vector<2x128xf32>
    %406 = arith.select %403, %404, %405 : vector<2x128xi1>, vector<2x128xf32>
    %407 = arith.maximumf %391, %400 : vector<2x128xf32>
    %408 = arith.maximumf %407, %406 : vector<2x128xf32>
    %409 = arith.subf %391, %408 : vector<2x128xf32>
    %410 = math.exp %409 : vector<2x128xf32>
    %411 = arith.subf %400, %408 : vector<2x128xf32>
    %412 = math.exp %411 : vector<2x128xf32>
    %413 = arith.addf %410, %412 : vector<2x128xf32>
    %414 = arith.subf %406, %408 : vector<2x128xf32>
    %415 = math.exp %414 : vector<2x128xf32>
    %416 = arith.addf %413, %415 : vector<2x128xf32>
    %417 = math.log %416 : vector<2x128xf32>
    %418 = arith.addf %408, %417 : vector<2x128xf32>
    %419 = arith.addf %418, %395 : vector<2x128xf32>
    %cst_129 = arith.constant -1.000000e+30 : f32
    %420 = vector.broadcast %cst_129 : f32 to vector<2x128xf32>
    %421 = arith.select %3, %419, %420 : vector<2x128xi1>, vector<2x128xf32>
    %c1_i32_130 = arith.constant 1 : i32
    %422 = arith.cmpi sge, %393, %c1_i32_130 : i32
    %423 = vector.broadcast %393 : i32 to vector<2x1xi32>
    %424 = arith.cmpi slt, %423, %7 : vector<2x1xi32>
    %425 = vector.broadcast %422 : i1 to vector<2x1xi1>
    %426 = arith.andi %425, %424 : vector<2x1xi1>
    %427 = vector.shape_cast %426 : vector<2x1xi1> to vector<2x1xi1>
    %428 = vector.broadcast %427 : vector<2x1xi1> to vector<2x128xi1>
    %429 = arith.select %428, %421, %391 : vector<2x128xi1>, vector<2x128xf32>
    %c16_i32_131 = arith.constant 16 : i32
    %430 = arith.muli %arg0, %c16_i32_131 : i32
    %c11_i32 = arith.constant 11 : i32
    %431 = arith.addi %430, %c11_i32 : i32
    %c0_132 = arith.constant 0 : index
    %c11 = arith.constant 11 : index
    %c0_133 = arith.constant 0 : index
    %432 = vector.load %arg4[%c0_132, %c11, %c0_133] : memref<2x16x128xf32, #tpu.memory_space<vmem>>, vector<2x1x128xf32>
    %433 = vector.shape_cast %432 : vector<2x1x128xf32> to vector<2x128xf32>
    %c1_i32_134 = arith.constant 1 : i32
    %434 = vector.broadcast %c1_i32_134 : i32 to vector<2x128xi32>
    %435 = arith.cmpi sge, %0, %434 : vector<2x128xi32>
    %c1_i32_135 = arith.constant 1 : i32
    %436 = tpu.dynamic_rotate %429 by %c1_i32_135 dim 1 : vector<2x128xf32>, i32 -> vector<2x128xf32>
    %cst_136 = arith.constant -1.000000e+30 : f32
    %437 = vector.broadcast %cst_136 : f32 to vector<2x128xf32>
    %438 = arith.select %435, %436, %437 : vector<2x128xi1>, vector<2x128xf32>
    %c2_i32_137 = arith.constant 2 : i32
    %439 = vector.broadcast %c2_i32_137 : i32 to vector<2x128xi32>
    %440 = arith.cmpi sge, %0, %439 : vector<2x128xi32>
    %441 = arith.andi %440, %6 : vector<2x128xi1>
    %c2_i32_138 = arith.constant 2 : i32
    %442 = tpu.dynamic_rotate %429 by %c2_i32_138 dim 1 : vector<2x128xf32>, i32 -> vector<2x128xf32>
    %cst_139 = arith.constant -1.000000e+30 : f32
    %443 = vector.broadcast %cst_139 : f32 to vector<2x128xf32>
    %444 = arith.select %441, %442, %443 : vector<2x128xi1>, vector<2x128xf32>
    %445 = arith.maximumf %429, %438 : vector<2x128xf32>
    %446 = arith.maximumf %445, %444 : vector<2x128xf32>
    %447 = arith.subf %429, %446 : vector<2x128xf32>
    %448 = math.exp %447 : vector<2x128xf32>
    %449 = arith.subf %438, %446 : vector<2x128xf32>
    %450 = math.exp %449 : vector<2x128xf32>
    %451 = arith.addf %448, %450 : vector<2x128xf32>
    %452 = arith.subf %444, %446 : vector<2x128xf32>
    %453 = math.exp %452 : vector<2x128xf32>
    %454 = arith.addf %451, %453 : vector<2x128xf32>
    %455 = math.log %454 : vector<2x128xf32>
    %456 = arith.addf %446, %455 : vector<2x128xf32>
    %457 = arith.addf %456, %433 : vector<2x128xf32>
    %cst_140 = arith.constant -1.000000e+30 : f32
    %458 = vector.broadcast %cst_140 : f32 to vector<2x128xf32>
    %459 = arith.select %3, %457, %458 : vector<2x128xi1>, vector<2x128xf32>
    %c1_i32_141 = arith.constant 1 : i32
    %460 = arith.cmpi sge, %431, %c1_i32_141 : i32
    %461 = vector.broadcast %431 : i32 to vector<2x1xi32>
    %462 = arith.cmpi slt, %461, %7 : vector<2x1xi32>
    %463 = vector.broadcast %460 : i1 to vector<2x1xi1>
    %464 = arith.andi %463, %462 : vector<2x1xi1>
    %465 = vector.shape_cast %464 : vector<2x1xi1> to vector<2x1xi1>
    %466 = vector.broadcast %465 : vector<2x1xi1> to vector<2x128xi1>
    %467 = arith.select %466, %459, %429 : vector<2x128xi1>, vector<2x128xf32>
    %c16_i32_142 = arith.constant 16 : i32
    %468 = arith.muli %arg0, %c16_i32_142 : i32
    %c12_i32 = arith.constant 12 : i32
    %469 = arith.addi %468, %c12_i32 : i32
    %c0_143 = arith.constant 0 : index
    %c12 = arith.constant 12 : index
    %c0_144 = arith.constant 0 : index
    %470 = vector.load %arg4[%c0_143, %c12, %c0_144] : memref<2x16x128xf32, #tpu.memory_space<vmem>>, vector<2x1x128xf32>
    %471 = vector.shape_cast %470 : vector<2x1x128xf32> to vector<2x128xf32>
    %c1_i32_145 = arith.constant 1 : i32
    %472 = vector.broadcast %c1_i32_145 : i32 to vector<2x128xi32>
    %473 = arith.cmpi sge, %0, %472 : vector<2x128xi32>
    %c1_i32_146 = arith.constant 1 : i32
    %474 = tpu.dynamic_rotate %467 by %c1_i32_146 dim 1 : vector<2x128xf32>, i32 -> vector<2x128xf32>
    %cst_147 = arith.constant -1.000000e+30 : f32
    %475 = vector.broadcast %cst_147 : f32 to vector<2x128xf32>
    %476 = arith.select %473, %474, %475 : vector<2x128xi1>, vector<2x128xf32>
    %c2_i32_148 = arith.constant 2 : i32
    %477 = vector.broadcast %c2_i32_148 : i32 to vector<2x128xi32>
    %478 = arith.cmpi sge, %0, %477 : vector<2x128xi32>
    %479 = arith.andi %478, %6 : vector<2x128xi1>
    %c2_i32_149 = arith.constant 2 : i32
    %480 = tpu.dynamic_rotate %467 by %c2_i32_149 dim 1 : vector<2x128xf32>, i32 -> vector<2x128xf32>
    %cst_150 = arith.constant -1.000000e+30 : f32
    %481 = vector.broadcast %cst_150 : f32 to vector<2x128xf32>
    %482 = arith.select %479, %480, %481 : vector<2x128xi1>, vector<2x128xf32>
    %483 = arith.maximumf %467, %476 : vector<2x128xf32>
    %484 = arith.maximumf %483, %482 : vector<2x128xf32>
    %485 = arith.subf %467, %484 : vector<2x128xf32>
    %486 = math.exp %485 : vector<2x128xf32>
    %487 = arith.subf %476, %484 : vector<2x128xf32>
    %488 = math.exp %487 : vector<2x128xf32>
    %489 = arith.addf %486, %488 : vector<2x128xf32>
    %490 = arith.subf %482, %484 : vector<2x128xf32>
    %491 = math.exp %490 : vector<2x128xf32>
    %492 = arith.addf %489, %491 : vector<2x128xf32>
    %493 = math.log %492 : vector<2x128xf32>
    %494 = arith.addf %484, %493 : vector<2x128xf32>
    %495 = arith.addf %494, %471 : vector<2x128xf32>
    %cst_151 = arith.constant -1.000000e+30 : f32
    %496 = vector.broadcast %cst_151 : f32 to vector<2x128xf32>
    %497 = arith.select %3, %495, %496 : vector<2x128xi1>, vector<2x128xf32>
    %c1_i32_152 = arith.constant 1 : i32
    %498 = arith.cmpi sge, %469, %c1_i32_152 : i32
    %499 = vector.broadcast %469 : i32 to vector<2x1xi32>
    %500 = arith.cmpi slt, %499, %7 : vector<2x1xi32>
    %501 = vector.broadcast %498 : i1 to vector<2x1xi1>
    %502 = arith.andi %501, %500 : vector<2x1xi1>
    %503 = vector.shape_cast %502 : vector<2x1xi1> to vector<2x1xi1>
    %504 = vector.broadcast %503 : vector<2x1xi1> to vector<2x128xi1>
    %505 = arith.select %504, %497, %467 : vector<2x128xi1>, vector<2x128xf32>
    %c16_i32_153 = arith.constant 16 : i32
    %506 = arith.muli %arg0, %c16_i32_153 : i32
    %c13_i32 = arith.constant 13 : i32
    %507 = arith.addi %506, %c13_i32 : i32
    %c0_154 = arith.constant 0 : index
    %c13 = arith.constant 13 : index
    %c0_155 = arith.constant 0 : index
    %508 = vector.load %arg4[%c0_154, %c13, %c0_155] : memref<2x16x128xf32, #tpu.memory_space<vmem>>, vector<2x1x128xf32>
    %509 = vector.shape_cast %508 : vector<2x1x128xf32> to vector<2x128xf32>
    %c1_i32_156 = arith.constant 1 : i32
    %510 = vector.broadcast %c1_i32_156 : i32 to vector<2x128xi32>
    %511 = arith.cmpi sge, %0, %510 : vector<2x128xi32>
    %c1_i32_157 = arith.constant 1 : i32
    %512 = tpu.dynamic_rotate %505 by %c1_i32_157 dim 1 : vector<2x128xf32>, i32 -> vector<2x128xf32>
    %cst_158 = arith.constant -1.000000e+30 : f32
    %513 = vector.broadcast %cst_158 : f32 to vector<2x128xf32>
    %514 = arith.select %511, %512, %513 : vector<2x128xi1>, vector<2x128xf32>
    %c2_i32_159 = arith.constant 2 : i32
    %515 = vector.broadcast %c2_i32_159 : i32 to vector<2x128xi32>
    %516 = arith.cmpi sge, %0, %515 : vector<2x128xi32>
    %517 = arith.andi %516, %6 : vector<2x128xi1>
    %c2_i32_160 = arith.constant 2 : i32
    %518 = tpu.dynamic_rotate %505 by %c2_i32_160 dim 1 : vector<2x128xf32>, i32 -> vector<2x128xf32>
    %cst_161 = arith.constant -1.000000e+30 : f32
    %519 = vector.broadcast %cst_161 : f32 to vector<2x128xf32>
    %520 = arith.select %517, %518, %519 : vector<2x128xi1>, vector<2x128xf32>
    %521 = arith.maximumf %505, %514 : vector<2x128xf32>
    %522 = arith.maximumf %521, %520 : vector<2x128xf32>
    %523 = arith.subf %505, %522 : vector<2x128xf32>
    %524 = math.exp %523 : vector<2x128xf32>
    %525 = arith.subf %514, %522 : vector<2x128xf32>
    %526 = math.exp %525 : vector<2x128xf32>
    %527 = arith.addf %524, %526 : vector<2x128xf32>
    %528 = arith.subf %520, %522 : vector<2x128xf32>
    %529 = math.exp %528 : vector<2x128xf32>
    %530 = arith.addf %527, %529 : vector<2x128xf32>
    %531 = math.log %530 : vector<2x128xf32>
    %532 = arith.addf %522, %531 : vector<2x128xf32>
    %533 = arith.addf %532, %509 : vector<2x128xf32>
    %cst_162 = arith.constant -1.000000e+30 : f32
    %534 = vector.broadcast %cst_162 : f32 to vector<2x128xf32>
    %535 = arith.select %3, %533, %534 : vector<2x128xi1>, vector<2x128xf32>
    %c1_i32_163 = arith.constant 1 : i32
    %536 = arith.cmpi sge, %507, %c1_i32_163 : i32
    %537 = vector.broadcast %507 : i32 to vector<2x1xi32>
    %538 = arith.cmpi slt, %537, %7 : vector<2x1xi32>
    %539 = vector.broadcast %536 : i1 to vector<2x1xi1>
    %540 = arith.andi %539, %538 : vector<2x1xi1>
    %541 = vector.shape_cast %540 : vector<2x1xi1> to vector<2x1xi1>
    %542 = vector.broadcast %541 : vector<2x1xi1> to vector<2x128xi1>
    %543 = arith.select %542, %535, %505 : vector<2x128xi1>, vector<2x128xf32>
    %c16_i32_164 = arith.constant 16 : i32
    %544 = arith.muli %arg0, %c16_i32_164 : i32
    %c14_i32 = arith.constant 14 : i32
    %545 = arith.addi %544, %c14_i32 : i32
    %c0_165 = arith.constant 0 : index
    %c14 = arith.constant 14 : index
    %c0_166 = arith.constant 0 : index
    %546 = vector.load %arg4[%c0_165, %c14, %c0_166] : memref<2x16x128xf32, #tpu.memory_space<vmem>>, vector<2x1x128xf32>
    %547 = vector.shape_cast %546 : vector<2x1x128xf32> to vector<2x128xf32>
    %c1_i32_167 = arith.constant 1 : i32
    %548 = vector.broadcast %c1_i32_167 : i32 to vector<2x128xi32>
    %549 = arith.cmpi sge, %0, %548 : vector<2x128xi32>
    %c1_i32_168 = arith.constant 1 : i32
    %550 = tpu.dynamic_rotate %543 by %c1_i32_168 dim 1 : vector<2x128xf32>, i32 -> vector<2x128xf32>
    %cst_169 = arith.constant -1.000000e+30 : f32
    %551 = vector.broadcast %cst_169 : f32 to vector<2x128xf32>
    %552 = arith.select %549, %550, %551 : vector<2x128xi1>, vector<2x128xf32>
    %c2_i32_170 = arith.constant 2 : i32
    %553 = vector.broadcast %c2_i32_170 : i32 to vector<2x128xi32>
    %554 = arith.cmpi sge, %0, %553 : vector<2x128xi32>
    %555 = arith.andi %554, %6 : vector<2x128xi1>
    %c2_i32_171 = arith.constant 2 : i32
    %556 = tpu.dynamic_rotate %543 by %c2_i32_171 dim 1 : vector<2x128xf32>, i32 -> vector<2x128xf32>
    %cst_172 = arith.constant -1.000000e+30 : f32
    %557 = vector.broadcast %cst_172 : f32 to vector<2x128xf32>
    %558 = arith.select %555, %556, %557 : vector<2x128xi1>, vector<2x128xf32>
    %559 = arith.maximumf %543, %552 : vector<2x128xf32>
    %560 = arith.maximumf %559, %558 : vector<2x128xf32>
    %561 = arith.subf %543, %560 : vector<2x128xf32>
    %562 = math.exp %561 : vector<2x128xf32>
    %563 = arith.subf %552, %560 : vector<2x128xf32>
    %564 = math.exp %563 : vector<2x128xf32>
    %565 = arith.addf %562, %564 : vector<2x128xf32>
    %566 = arith.subf %558, %560 : vector<2x128xf32>
    %567 = math.exp %566 : vector<2x128xf32>
    %568 = arith.addf %565, %567 : vector<2x128xf32>
    %569 = math.log %568 : vector<2x128xf32>
    %570 = arith.addf %560, %569 : vector<2x128xf32>
    %571 = arith.addf %570, %547 : vector<2x128xf32>
    %cst_173 = arith.constant -1.000000e+30 : f32
    %572 = vector.broadcast %cst_173 : f32 to vector<2x128xf32>
    %573 = arith.select %3, %571, %572 : vector<2x128xi1>, vector<2x128xf32>
    %c1_i32_174 = arith.constant 1 : i32
    %574 = arith.cmpi sge, %545, %c1_i32_174 : i32
    %575 = vector.broadcast %545 : i32 to vector<2x1xi32>
    %576 = arith.cmpi slt, %575, %7 : vector<2x1xi32>
    %577 = vector.broadcast %574 : i1 to vector<2x1xi1>
    %578 = arith.andi %577, %576 : vector<2x1xi1>
    %579 = vector.shape_cast %578 : vector<2x1xi1> to vector<2x1xi1>
    %580 = vector.broadcast %579 : vector<2x1xi1> to vector<2x128xi1>
    %581 = arith.select %580, %573, %543 : vector<2x128xi1>, vector<2x128xf32>
    %c16_i32_175 = arith.constant 16 : i32
    %582 = arith.muli %arg0, %c16_i32_175 : i32
    %c15_i32 = arith.constant 15 : i32
    %583 = arith.addi %582, %c15_i32 : i32
    %c0_176 = arith.constant 0 : index
    %c15 = arith.constant 15 : index
    %c0_177 = arith.constant 0 : index
    %584 = vector.load %arg4[%c0_176, %c15, %c0_177] : memref<2x16x128xf32, #tpu.memory_space<vmem>>, vector<2x1x128xf32>
    %585 = vector.shape_cast %584 : vector<2x1x128xf32> to vector<2x128xf32>
    %c1_i32_178 = arith.constant 1 : i32
    %586 = vector.broadcast %c1_i32_178 : i32 to vector<2x128xi32>
    %587 = arith.cmpi sge, %0, %586 : vector<2x128xi32>
    %c1_i32_179 = arith.constant 1 : i32
    %588 = tpu.dynamic_rotate %581 by %c1_i32_179 dim 1 : vector<2x128xf32>, i32 -> vector<2x128xf32>
    %cst_180 = arith.constant -1.000000e+30 : f32
    %589 = vector.broadcast %cst_180 : f32 to vector<2x128xf32>
    %590 = arith.select %587, %588, %589 : vector<2x128xi1>, vector<2x128xf32>
    %c2_i32_181 = arith.constant 2 : i32
    %591 = vector.broadcast %c2_i32_181 : i32 to vector<2x128xi32>
    %592 = arith.cmpi sge, %0, %591 : vector<2x128xi32>
    %593 = arith.andi %592, %6 : vector<2x128xi1>
    %c2_i32_182 = arith.constant 2 : i32
    %594 = tpu.dynamic_rotate %581 by %c2_i32_182 dim 1 : vector<2x128xf32>, i32 -> vector<2x128xf32>
    %cst_183 = arith.constant -1.000000e+30 : f32
    %595 = vector.broadcast %cst_183 : f32 to vector<2x128xf32>
    %596 = arith.select %593, %594, %595 : vector<2x128xi1>, vector<2x128xf32>
    %597 = arith.maximumf %581, %590 : vector<2x128xf32>
    %598 = arith.maximumf %597, %596 : vector<2x128xf32>
    %599 = arith.subf %581, %598 : vector<2x128xf32>
    %600 = math.exp %599 : vector<2x128xf32>
    %601 = arith.subf %590, %598 : vector<2x128xf32>
    %602 = math.exp %601 : vector<2x128xf32>
    %603 = arith.addf %600, %602 : vector<2x128xf32>
    %604 = arith.subf %596, %598 : vector<2x128xf32>
    %605 = math.exp %604 : vector<2x128xf32>
    %606 = arith.addf %603, %605 : vector<2x128xf32>
    %607 = math.log %606 : vector<2x128xf32>
    %608 = arith.addf %598, %607 : vector<2x128xf32>
    %609 = arith.addf %608, %585 : vector<2x128xf32>
    %cst_184 = arith.constant -1.000000e+30 : f32
    %610 = vector.broadcast %cst_184 : f32 to vector<2x128xf32>
    %611 = arith.select %3, %609, %610 : vector<2x128xi1>, vector<2x128xf32>
    %c1_i32_185 = arith.constant 1 : i32
    %612 = arith.cmpi sge, %583, %c1_i32_185 : i32
    %613 = vector.broadcast %583 : i32 to vector<2x1xi32>
    %614 = arith.cmpi slt, %613, %7 : vector<2x1xi32>
    %615 = vector.broadcast %612 : i1 to vector<2x1xi1>
    %616 = arith.andi %615, %614 : vector<2x1xi1>
    %617 = vector.shape_cast %616 : vector<2x1xi1> to vector<2x1xi1>
    %618 = vector.broadcast %617 : vector<2x1xi1> to vector<2x128xi1>
    %619 = arith.select %618, %611, %581 : vector<2x128xi1>, vector<2x128xf32>
    %c0_186 = arith.constant 0 : index
    %c0_187 = arith.constant 0 : index
    %620 = vector.load %arg5[%c0_186, %c0_187] : memref<2x128xf32, #tpu.memory_space<vmem>>, vector<2x128xf32>
    tpu.vector_store %arg5[%c0_186, %c0_187], %619 {strides = array<i32>} : memref<2x128xf32, #tpu.memory_space<vmem>>, vector<2x128xf32>,
    return
  }
  func.func @transform_0(%arg0: i32) -> (i32, i32) {
    %c0_i32 = arith.constant 0 : i32
    %c0_i32_0 = arith.constant 0 : i32
    %c0_i32_1 = arith.constant 0 : i32
    return %c0_i32, %c0_i32_0 : i32, i32
  }
  func.func @transform_1(%arg0: i32) -> (i32, i32) {
    %c0_i32 = arith.constant 0 : i32
    %c0_i32_0 = arith.constant 0 : i32
    %c0_i32_1 = arith.constant 0 : i32
    return %c0_i32, %c0_i32_0 : i32, i32
  }
  func.func @transform_2(%arg0: i32) -> (i32, i32) {
    %c0_i32 = arith.constant 0 : i32
    %c0_i32_0 = arith.constant 0 : i32
    %c0_i32_1 = arith.constant 0 : i32
    return %c0_i32, %c0_i32_0 : i32, i32
  }
  func.func @transform_3(%arg0: i32) -> (i32, i32, i32) {
    %c0_i32 = arith.constant 0 : i32
    %c0_i32_0 = arith.constant 0 : i32
    %c0_i32_1 = arith.constant 0 : i32
    return %c0_i32, %arg0, %c0_i32_0 : i32, i32, i32
  }
  func.func @transform_4(%arg0: i32) -> (i32, i32) {
    %c0_i32 = arith.constant 0 : i32
    %c0_i32_0 = arith.constant 0 : i32
    %c0_i32_1 = arith.constant 0 : i32
    return %c0_i32, %c0_i32_0 : i32, i32
  }
}

module attributes {stable_mosaic.version = 11 : i64} {
  func.func @proj_lse_gather_kernel(%arg0: i32, %arg1: i32, %arg2: i32, %arg3: memref<1x16x128xbf16, #tpu.memory_space<vmem>>, %arg4: memref<128x128xbf16, #tpu.memory_space<vmem>>, %arg5: memref<1x128xf32, #tpu.memory_space<vmem>>, %arg6: memref<1x128x128xbf16, #tpu.memory_space<vmem>>, %arg7: memref<1x1x128xf32, #tpu.memory_space<vmem>>, %arg8: memref<1x16x128xf32, #tpu.memory_space<vmem>>, %arg9: memref<16x1xf32, #tpu.memory_space<vmem>>, %arg10: memref<16x1xf32, #tpu.memory_space<vmem>>) attributes {dimension_semantics = [#tpu.dimension_semantics<parallel>, #tpu.dimension_semantics<parallel>, #tpu.dimension_semantics<arbitrary>], iteration_bounds = array<i64: 2, 1, 1>, scalar_prefetch = 0 : i64, scratch_operands = 2 : i64, tpu.core_type = #tpu.core_type<tc>, window_params = [{transform_indices = @transform_0, window_bounds = array<i64: 1, 16, 128>}, {transform_indices = @transform_1, window_bounds = array<i64: 128, 128>}, {transform_indices = @transform_2, window_bounds = array<i64: 1, 128>}, {transform_indices = @transform_3, window_bounds = array<i64: 1, 128, 128>}, {transform_indices = @transform_4, window_bounds = array<i64: 1, 1, 128>}, {transform_indices = @transform_5, window_bounds = array<i64: 1, 16, 128>}]} {
    %c0 = arith.constant 0 : index
    %c0_0 = arith.constant 0 : index
    %c0_1 = arith.constant 0 : index
    %0 = vector.load %arg3[%c0, %c0_0, %c0_1] : memref<1x16x128xbf16, #tpu.memory_space<vmem>>, vector<1x16x128xbf16>
    %1 = vector.shape_cast %0 : vector<1x16x128xbf16> to vector<16x128xbf16>
    %c0_2 = arith.constant 0 : index
    %c0_3 = arith.constant 0 : index
    %2 = vector.load %arg4[%c0_2, %c0_3] : memref<128x128xbf16, #tpu.memory_space<vmem>>, vector<128x128xbf16>
    %cst = arith.constant dense<0.000000e+00> : vector<16x128xf32>
    %3 = tpu.matmul %1, %2, %cst {dimension_numbers = #tpu.dot_dimension_numbers<[1], [0], [0], [1], [0, 0, 1, 1], [], []>} : vector<16x128xbf16>, vector<128x128xbf16>, vector<16x128xf32> -> vector<16x128xf32>
    %c0_4 = arith.constant 0 : index
    %c0_5 = arith.constant 0 : index
    %4 = vector.load %arg5[%c0_4, %c0_5] : memref<1x128xf32, #tpu.memory_space<vmem>>, vector<1x128xf32>
    %5 = vector.broadcast %4 : vector<1x128xf32> to vector<16x128xf32>
    %6 = arith.addf %3, %5 : vector<16x128xf32>
    %cst_6 = arith.constant dense<0xFF800000> : vector<16xf32>
    %7 = vector.multi_reduction <maximumf>, %6, %cst_6 [1] : vector<16x128xf32> to vector<16xf32>
    %8 = vector.shape_cast %7 : vector<16xf32> to vector<16x1xf32>
    %c0_i32 = arith.constant 0 : i32
    %9 = arith.cmpi eq, %arg2, %c0_i32 : i32
    %10 = arith.extui %9 : i1 to i32
    %c0_i32_7 = arith.constant 0 : i32
    %11 = arith.cmpi ne, %10, %c0_i32_7 : i32
    scf.if %11 {
      %cst_19 = arith.constant -1.000000e+30 : f32
      %29 = vector.broadcast %cst_19 : f32 to vector<16x1xf32>
      %c0_20 = arith.constant 0 : index
      %c0_21 = arith.constant 0 : index
      %30 = vector.load %arg9[%c0_20, %c0_21] : memref<16x1xf32, #tpu.memory_space<vmem>>, vector<16x1xf32>
      tpu.vector_store %arg9[%c0_20, %c0_21], %29 {strides = array<i32>} : memref<16x1xf32, #tpu.memory_space<vmem>>, vector<16x1xf32>,
      %cst_22 = arith.constant 0.000000e+00 : f32
      %31 = vector.broadcast %cst_22 : f32 to vector<16x1xf32>
      %c0_23 = arith.constant 0 : index
      %c0_24 = arith.constant 0 : index
      %32 = vector.load %arg10[%c0_23, %c0_24] : memref<16x1xf32, #tpu.memory_space<vmem>>, vector<16x1xf32>
      tpu.vector_store %arg10[%c0_23, %c0_24], %31 {strides = array<i32>} : memref<16x1xf32, #tpu.memory_space<vmem>>, vector<16x1xf32>,
    } else {
    }
    %c0_8 = arith.constant 0 : index
    %c0_9 = arith.constant 0 : index
    %12 = vector.load %arg9[%c0_8, %c0_9] : memref<16x1xf32, #tpu.memory_space<vmem>>, vector<16x1xf32>
    %13 = arith.maximumf %12, %8 : vector<16x1xf32>
    %c0_10 = arith.constant 0 : index
    %c0_11 = arith.constant 0 : index
    %14 = vector.load %arg10[%c0_10, %c0_11] : memref<16x1xf32, #tpu.memory_space<vmem>>, vector<16x1xf32>
    %15 = arith.subf %12, %13 : vector<16x1xf32>
    %16 = math.exp %15 : vector<16x1xf32>
    %17 = arith.mulf %14, %16 : vector<16x1xf32>
    %18 = vector.broadcast %13 : vector<16x1xf32> to vector<16x128xf32>
    %19 = arith.subf %6, %18 : vector<16x128xf32>
    %20 = math.exp %19 : vector<16x128xf32>
    %cst_12 = arith.constant dense<0.000000e+00> : vector<16xf32>
    %21 = vector.multi_reduction <add>, %20, %cst_12 [1] : vector<16x128xf32> to vector<16xf32>
    %22 = vector.shape_cast %21 : vector<16xf32> to vector<16x1xf32>
    %23 = arith.addf %17, %22 : vector<16x1xf32>
    %c0_13 = arith.constant 0 : index
    %c0_14 = arith.constant 0 : index
    %24 = vector.load %arg10[%c0_13, %c0_14] : memref<16x1xf32, #tpu.memory_space<vmem>>, vector<16x1xf32>
    tpu.vector_store %arg10[%c0_13, %c0_14], %23 {strides = array<i32>} : memref<16x1xf32, #tpu.memory_space<vmem>>, vector<16x1xf32>,
    %c0_15 = arith.constant 0 : index
    %c0_16 = arith.constant 0 : index
    %25 = vector.load %arg9[%c0_15, %c0_16] : memref<16x1xf32, #tpu.memory_space<vmem>>, vector<16x1xf32>
    tpu.vector_store %arg9[%c0_15, %c0_16], %13 {strides = array<i32>} : memref<16x1xf32, #tpu.memory_space<vmem>>, vector<16x1xf32>,
    %c0_i32_17 = arith.constant 0 : i32
    %26 = arith.cmpi eq, %arg2, %c0_i32_17 : i32
    %27 = arith.extui %26 : i1 to i32
    %c0_i32_18 = arith.constant 0 : i32
    %28 = arith.cmpi ne, %27, %c0_i32_18 : i32
    scf.if %28 {
      %c0_19 = arith.constant 0 : index
      %c0_20 = arith.constant 0 : index
      %29 = vector.load %arg9[%c0_19, %c0_20] : memref<16x1xf32, #tpu.memory_space<vmem>>, vector<16x1xf32>
      %c0_21 = arith.constant 0 : index
      %c0_22 = arith.constant 0 : index
      %30 = vector.load %arg10[%c0_21, %c0_22] : memref<16x1xf32, #tpu.memory_space<vmem>>, vector<16x1xf32>
      %31 = math.log %30 : vector<16x1xf32>
      %32 = arith.addf %29, %31 : vector<16x1xf32>
      %c0_23 = arith.constant 0 : index
      %c0_24 = arith.constant 0 : index
      %c0_25 = arith.constant 0 : index
      %33 = vector.load %arg3[%c0_23, %c0_24, %c0_25] : memref<1x16x128xbf16, #tpu.memory_space<vmem>>, vector<1x16x128xbf16>
      %34 = vector.shape_cast %33 : vector<1x16x128xbf16> to vector<16x128xbf16>
      %c0_26 = arith.constant 0 : index
      %c0_27 = arith.constant 0 : index
      %c0_28 = arith.constant 0 : index
      %35 = vector.load %arg6[%c0_26, %c0_27, %c0_28] : memref<1x128x128xbf16, #tpu.memory_space<vmem>>, vector<1x128x128xbf16>
      %36 = vector.shape_cast %35 : vector<1x128x128xbf16> to vector<128x128xbf16>
      %cst_29 = arith.constant dense<0.000000e+00> : vector<16x128xf32>
      %37 = tpu.matmul %34, %36, %cst_29 {dimension_numbers = #tpu.dot_dimension_numbers<[1], [0], [0], [1], [0, 0, 1, 1], [], []>} : vector<16x128xbf16>, vector<128x128xbf16>, vector<16x128xf32> -> vector<16x128xf32>
      %c0_30 = arith.constant 0 : index
      %c0_31 = arith.constant 0 : index
      %c0_32 = arith.constant 0 : index
      %38 = vector.load %arg7[%c0_30, %c0_31, %c0_32] : memref<1x1x128xf32, #tpu.memory_space<vmem>>, vector<1x1x128xf32>
      %39 = vector.shape_cast %38 : vector<1x1x128xf32> to vector<1x128xf32>
      %40 = vector.broadcast %39 : vector<1x128xf32> to vector<16x128xf32>
      %41 = arith.addf %37, %40 : vector<16x128xf32>
      %42 = vector.broadcast %32 : vector<16x1xf32> to vector<16x128xf32>
      %43 = arith.subf %41, %42 : vector<16x128xf32>
      %c0_33 = arith.constant 0 : index
      %c0_34 = arith.constant 0 : index
      %c0_35 = arith.constant 0 : index
      %44 = vector.load %arg8[%c0_33, %c0_34, %c0_35] : memref<1x16x128xf32, #tpu.memory_space<vmem>>, vector<1x16x128xf32>
      %45 = vector.shape_cast %44 : vector<1x16x128xf32> to vector<16x128xf32>
      %46 = vector.shape_cast %43 : vector<16x128xf32> to vector<1x16x128xf32>
      tpu.vector_store %arg8[%c0_33, %c0_34, %c0_35], %46 {strides = array<i32>} : memref<1x16x128xf32, #tpu.memory_space<vmem>>, vector<1x16x128xf32>,
    } else {
    }
    return
  }
  func.func @transform_0(%arg0: i32, %arg1: i32, %arg2: i32) -> (i32, i32, i32) {
    %c0_i32 = arith.constant 0 : i32
    %c0_i32_0 = arith.constant 0 : i32
    return %arg0, %arg1, %c0_i32 : i32, i32, i32
  }
  func.func @transform_1(%arg0: i32, %arg1: i32, %arg2: i32) -> (i32, i32) {
    %c0_i32 = arith.constant 0 : i32
    %c0_i32_0 = arith.constant 0 : i32
    return %c0_i32, %arg2 : i32, i32
  }
  func.func @transform_2(%arg0: i32, %arg1: i32, %arg2: i32) -> (i32, i32) {
    %c0_i32 = arith.constant 0 : i32
    %c0_i32_0 = arith.constant 0 : i32
    return %c0_i32, %arg2 : i32, i32
  }
  func.func @transform_3(%arg0: i32, %arg1: i32, %arg2: i32) -> (i32, i32, i32) {
    %c0_i32 = arith.constant 0 : i32
    %c0_i32_0 = arith.constant 0 : i32
    %c0_i32_1 = arith.constant 0 : i32
    return %arg0, %c0_i32, %c0_i32_0 : i32, i32, i32
  }
  func.func @transform_4(%arg0: i32, %arg1: i32, %arg2: i32) -> (i32, i32, i32) {
    %c0_i32 = arith.constant 0 : i32
    %c0_i32_0 = arith.constant 0 : i32
    %c0_i32_1 = arith.constant 0 : i32
    return %arg0, %c0_i32, %c0_i32_0 : i32, i32, i32
  }
  func.func @transform_5(%arg0: i32, %arg1: i32, %arg2: i32) -> (i32, i32, i32) {
    %c0_i32 = arith.constant 0 : i32
    %c0_i32_0 = arith.constant 0 : i32
    return %arg0, %arg1, %c0_i32 : i32, i32, i32
  }
}

</mosaic_0001>

<llo_original>
// kernel: cat_model_forward.3
$region0: #{cat_model_forward.3}
  #allocation0 [shape = 'u32[]', space=smem, size = 0x4, offset = 0x4, fixed_abs, tag = 'smem constant byte address 0x4 - core index']
  #allocation1 [shape = 'u32[144,128]{1,0:T(1,128)}', space=vmem, size = 0x12000, scoped, tag = 'internal scratch']
  %s0 = inlined_call_operand.vmem [shape: s32[2,1], index: 0, kind: input, shape index: {}]
  %s1 = inlined_call_operand.vmem [shape: f32[2,128], index: 1, kind: input, shape index: {}]
  %s2 = inlined_call_operand.vmem [shape: f32[2,128], index: 2, kind: input, shape index: {}]
  %s3 = inlined_call_operand.vmem [shape: f32[2,16,128], index: 3, kind: input, shape index: {}]
  %s4 = inlined_call_operand.vmem [shape: f32[2,128], index: 4, kind: output, shape index: {}]
  %s5 = sld [smem:[#allocation0]]
  $region30: #{cat_model_forward.3} parent=0
    _
  %s7 = ssub.s32 1, %s5
  %s8 = scalar_select 0, %s7, %s5
  // Predicated region
  $region2: #{cat_model_forward.3} parent=0 // pred_check
    _
  $region3: #{cat_model_forward.3} parent=0 // pred_check_branch
    %10 = sbr.rel (0) target = $region5
  $region4: #{cat_model_forward.3} parent=0 // pred_region
    _
  $region5: #{cat_model_forward.3} parent=0 // pred_fallthru
    _
  // Predicated region
  $region6: #{cat_model_forward.3} parent=0 // pred_check
    _
  $region7: #{cat_model_forward.3} parent=0 // pred_check_branch
    %12 = sbr.rel (0) target = $region9
  $region8: #{cat_model_forward.3} parent=0 // pred_region
    _
  $region9: #{cat_model_forward.3} parent=0 // pred_fallthru
    _
  // Predicated region
  $region10: #{cat_model_forward.3} parent=0 // pred_check
    _
  $region11: #{cat_model_forward.3} parent=0 // pred_check_branch
    %14 = sbr.rel (0) target = $region13
  $region12: #{cat_model_forward.3} parent=0 // pred_region
    _
  $region13: #{cat_model_forward.3} parent=0 // pred_fallthru
    _
  // Predicated region
  $region14: #{cat_model_forward.3} parent=0 // pred_check
    _
  $region15: #{cat_model_forward.3} parent=0 // pred_check_branch
    %16 = sbr.rel (0) target = $region17
  $region16: #{cat_model_forward.3} parent=0 // pred_region
    _
  $region17: #{cat_model_forward.3} parent=0 // pred_fallthru
    _
  %v17 = vlaneseq
  %v18 = vand.u32 %v17, 127
  %v19 = vld [vmem:[%s1] sm:$0x3]
  %vm20 = vcmp.gt.f32.partialorder %v19, 0.5
  %v21 = vld [vmem:[%s2] sm:$0x3]
  %vm22 = vcmp.gt.f32.partialorder %v21, 0.5
  %v23 = vld [vmem:[%s0] sm:$0x3]
  %p24 = scmp.eq.s32.totalorder 0, 0
  // Predicated region
  $region18: #{cat_model_forward.3} parent=0 // pred_check
    %p25 = pneg %p24
  $region19: #{cat_model_forward.3} parent=0 // pred_check_branch
    %27 = sbr.rel (%p25) target = $region21
  $region20: #{cat_model_forward.3} parent=0 // pred_region
    %v28 = vld [vmem:[%s3] sm:$0x1]
    %v29 = vld [vmem:[%s3 + $0x10] sm:$0x1]
    %vm30 = vcmp.le.s32.totalorder %v18, 1
    %vm31 = vmand %vm30, %vm20
    %v34 = vrot.slane %v29, 7
    %vm35 = vcmask 1041409
    %v36 = vsel %vm35, %v34, %v28
    %v38 = vsel %vm31, %v36, -1e+30
    %39 = vst [vmem:[%s4] sm:$0x3] %v38
  $region21: #{cat_model_forward.3} parent=0 // pred_fallthru
    _
  %v40 = vld [vmem:[%s4] sm:$0x3]
  %s41 = smul.u32 0, 16
  %v42 = vld [vmem:[%s3] sm:$0x1]
  %v43 = vld [vmem:[%s3 + $0x10] sm:$0x1]
  %vm44 = vcmp.ge.s32.totalorder %v18, 1
  %45 = vrot.lane.b32.xlu0 %v40, 1
  %v46 = vpop.permute.xlu0 %45
  %v47 = vsel %vm44, %v46, -1e+30
  %vm48 = vcmp.ge.s32.totalorder %v18, 2
  %vm49 = vmand %vm48, %vm22
  %50 = vrot.lane.b32.xlu0 %v40, 2
  %v51 = vpop.permute.xlu0 %50
  %v52 = vsel %vm49, %v51, -1e+30
  %v53 = vmax.f32 %v40, %v47
  %v54 = vmax.f32 %v53, %v52
  %v55 = vsub.f32 %v40, %v54
  %v56 = vmul.f32 %v55, 1.442695
  %v57 = vpow.pop %v56
  %v58 = vsub.f32 %v47, %v54
  %v59 = vmul.f32 %v58, 1.442695
  %v60 = vpow.pop %v59
  %v61 = vadd.f32 %v57, %v60
  %v62 = vsub.f32 %v52, %v54
  %v63 = vmul.f32 %v62, 1.442695
  %v64 = vpow.pop %v63
  %v65 = vadd.f32 %v61, %v64
  %v66 = vlog2.pop %v65
  %v67 = vmul.f32 %v66, 0.6931472
  %v68 = vadd.f32 %v54, %v67
  %v71 = vrot.slane %v43, 7
  %vm72 = vcmask 1041409
  %v73 = vsel %vm72, %v71, %v42
  %v75 = vadd.f32 %v68, %v73
  %v76 = vsel %vm20, %v75, -1e+30
  %p77 = scmp.ge.s32.totalorder %s41, 1
  %v78 = vstv %s41
  %vm79 = vcmp.lt.s32.totalorder %v78, %v23
  %s80 = scalar_select %p77, 1, 0
  %v81 = vstv %s80
  %vm82 = vcmp.eq.s32.totalorder %v81, 1
  %vm83 = vmand %vm82, %vm79
  %v84 = vsel %vm83, 1, 0
  %85 = vset.pattern.permute.xlu0 0
  %86 = vperm.xlu0 %85, %v84
  %v87 = vpop.permute.xlu0 %86
  %vm88 = vcmp.eq.s32.totalorder %v87, 1
  %v89 = vsel %vm88, %v76, %v40
  %s90 = sadd.s32 %s41, 1
  %v91 = vld [vmem:[%s3 + $0x1] sm:$0x1]
  %v92 = vld [vmem:[%s3 + $0x11] sm:$0x1]
  %93 = vrot.lane.b32.xlu0 %v89, 1
  %v94 = vpop.permute.xlu0 %93
  %v95 = vsel %vm44, %v94, -1e+30
  %96 = vrot.lane.b32.xlu0 %v89, 2
  %v97 = vpop.permute.xlu0 %96
  %v98 = vsel %vm49, %v97, -1e+30
  %v99 = vmax.f32 %v89, %v95
  %v100 = vmax.f32 %v99, %v98
  %v101 = vsub.f32 %v89, %v100
  %v102 = vmul.f32 %v101, 1.442695
  %v103 = vpow.pop %v102
  %v104 = vsub.f32 %v95, %v100
  %v105 = vmul.f32 %v104, 1.442695
  %v106 = vpow.pop %v105
  %v107 = vadd.f32 %v103, %v106
  %v108 = vsub.f32 %v98, %v100
  %v109 = vmul.f32 %v108, 1.442695
  %v110 = vpow.pop %v109
  %v111 = vadd.f32 %v107, %v110
  %v112 = vlog2.pop %v111
  %v113 = vmul.f32 %v112, 0.6931472
  %v114 = vadd.f32 %v100, %v113
  %v117 = vrot.slane %v92, 7
  %v118 = vsel %vm72, %v117, %v91
  %v120 = vadd.f32 %v114, %v118
  %v121 = vsel %vm20, %v120, -1e+30
  %p122 = scmp.ge.s32.totalorder %s90, 1
  %v123 = vstv %s90
  %vm124 = vcmp.lt.s32.totalorder %v123, %v23
  %s125 = scalar_select %p122, 1, 0
  %v126 = vstv %s125
  %vm127 = vcmp.eq.s32.totalorder %v126, 1
  %vm128 = vmand %vm127, %vm124
  %v129 = vsel %vm128, 1, 0
  %130 = vset.pattern.permute.xlu0 0
  %131 = vperm.xlu0 %130, %v129
  %v132 = vpop.permute.xlu0 %131
  %vm133 = vcmp.eq.s32.totalorder %v132, 1
  %v134 = vsel %vm133, %v121, %v89
  %s135 = sadd.s32 %s41, 2
  %v136 = vld [vmem:[%s3 + $0x2] sm:$0x1]
  %v137 = vld [vmem:[%s3 + $0x12] sm:$0x1]
  %138 = vrot.lane.b32.xlu0 %v134, 1
  %v139 = vpop.permute.xlu0 %138
  %v140 = vsel %vm44, %v139, -1e+30
  %141 = vrot.lane.b32.xlu0 %v134, 2
  %v142 = vpop.permute.xlu0 %141
  %v143 = vsel %vm49, %v142, -1e+30
  %v144 = vmax.f32 %v134, %v140
  %v145 = vmax.f32 %v144, %v143
  %v146 = vsub.f32 %v134, %v145
  %v147 = vmul.f32 %v146, 1.442695
  %v148 = vpow.pop %v147
  %v149 = vsub.f32 %v140, %v145
  %v150 = vmul.f32 %v149, 1.442695
  %v151 = vpow.pop %v150
  %v152 = vadd.f32 %v148, %v151
  %v153 = vsub.f32 %v143, %v145
  %v154 = vmul.f32 %v153, 1.442695
  %v155 = vpow.pop %v154
  %v156 = vadd.f32 %v152, %v155
  %v157 = vlog2.pop %v156
  %v158 = vmul.f32 %v157, 0.6931472
  %v159 = vadd.f32 %v145, %v158
  %v162 = vrot.slane %v137, 7
  %v163 = vsel %vm72, %v162, %v136
  %v165 = vadd.f32 %v159, %v163
  %v166 = vsel %vm20, %v165, -1e+30
  %p167 = scmp.ge.s32.totalorder %s135, 1
  %v168 = vstv %s135
  %vm169 = vcmp.lt.s32.totalorder %v168, %v23
  %s170 = scalar_select %p167, 1, 0
  %v171 = vstv %s170
  %vm172 = vcmp.eq.s32.totalorder %v171, 1
  %vm173 = vmand %vm172, %vm169
  %v174 = vsel %vm173, 1, 0
  %175 = vset.pattern.permute.xlu0 0
  %176 = vperm.xlu0 %175, %v174
  %v177 = vpop.permute.xlu0 %176
  %vm178 = vcmp.eq.s32.totalorder %v177, 1
  %v179 = vsel %vm178, %v166, %v134
  %s180 = sadd.s32 %s41, 3
  %v181 = vld [vmem:[%s3 + $0x3] sm:$0x1]
  %v182 = vld [vmem:[%s3 + $0x13] sm:$0x1]
  %183 = vrot.lane.b32.xlu0 %v179, 1
  %v184 = vpop.permute.xlu0 %183
  %v185 = vsel %vm44, %v184, -1e+30
  %186 = vrot.lane.b32.xlu0 %v179, 2
  %v187 = vpop.permute.xlu0 %186
  %v188 = vsel %vm49, %v187, -1e+30
  %v189 = vmax.f32 %v179, %v185
  %v190 = vmax.f32 %v189, %v188
  %v191 = vsub.f32 %v179, %v190
  %v192 = vmul.f32 %v191, 1.442695
  %v193 = vpow.pop %v192
  %v194 = vsub.f32 %v185, %v190
  %v195 = vmul.f32 %v194, 1.442695
  %v196 = vpow.pop %v195
  %v197 = vadd.f32 %v193, %v196
  %v198 = vsub.f32 %v188, %v190
  %v199 = vmul.f32 %v198, 1.442695
  %v200 = vpow.pop %v199
  %v201 = vadd.f32 %v197, %v200
  %v202 = vlog2.pop %v201
  %v203 = vmul.f32 %v202, 0.6931472
  %v204 = vadd.f32 %v190, %v203
  %v207 = vrot.slane %v182, 7
  %v208 = vsel %vm72, %v207, %v181
  %v210 = vadd.f32 %v204, %v208
  %v211 = vsel %vm20, %v210, -1e+30
  %p212 = scmp.ge.s32.totalorder %s180, 1
  %v213 = vstv %s180
  %vm214 = vcmp.lt.s32.totalorder %v213, %v23
  %s215 = scalar_select %p212, 1, 0
  %v216 = vstv %s215
  %vm217 = vcmp.eq.s32.totalorder %v216, 1
  %vm218 = vmand %vm217, %vm214
  %v219 = vsel %vm218, 1, 0
  %220 = vset.pattern.permute.xlu0 0
  %221 = vperm.xlu0 %220, %v219
  %v222 = vpop.permute.xlu0 %221
  %vm223 = vcmp.eq.s32.totalorder %v222, 1
  %v224 = vsel %vm223, %v211, %v179
  %s225 = sadd.s32 %s41, 4
  %v226 = vld [vmem:[%s3 + $0x4] sm:$0x1]
  %v227 = vld [vmem:[%s3 + $0x14] sm:$0x1]
  %228 = vrot.lane.b32.xlu0 %v224, 1
  %v229 = vpop.permute.xlu0 %228
  %v230 = vsel %vm44, %v229, -1e+30
  %231 = vrot.lane.b32.xlu0 %v224, 2
  %v232 = vpop.permute.xlu0 %231
  %v233 = vsel %vm49, %v232, -1e+30
  %v234 = vmax.f32 %v224, %v230
  %v235 = vmax.f32 %v234, %v233
  %v236 = vsub.f32 %v224, %v235
  %v237 = vmul.f32 %v236, 1.442695
  %v238 = vpow.pop %v237
  %v239 = vsub.f32 %v230, %v235
  %v240 = vmul.f32 %v239, 1.442695
  %v241 = vpow.pop %v240
  %v242 = vadd.f32 %v238, %v241
  %v243 = vsub.f32 %v233, %v235
  %v244 = vmul.f32 %v243, 1.442695
  %v245 = vpow.pop %v244
  %v246 = vadd.f32 %v242, %v245
  %v247 = vlog2.pop %v246
  %v248 = vmul.f32 %v247, 0.6931472
  %v249 = vadd.f32 %v235, %v248
  %v252 = vrot.slane %v227, 7
  %v253 = vsel %vm72, %v252, %v226
  %v255 = vadd.f32 %v249, %v253
  %v256 = vsel %vm20, %v255, -1e+30
  %p257 = scmp.ge.s32.totalorder %s225, 1
  %v258 = vstv %s225
  %vm259 = vcmp.lt.s32.totalorder %v258, %v23
  %s260 = scalar_select %p257, 1, 0
  %v261 = vstv %s260
  %vm262 = vcmp.eq.s32.totalorder %v261, 1
  %vm263 = vmand %vm262, %vm259
  %v264 = vsel %vm263, 1, 0
  %265 = vset.pattern.permute.xlu0 0
  %266 = vperm.xlu0 %265, %v264
  %v267 = vpop.permute.xlu0 %266
  %vm268 = vcmp.eq.s32.totalorder %v267, 1
  %v269 = vsel %vm268, %v256, %v224
  %s270 = sadd.s32 %s41, 5
  %v271 = vld [vmem:[%s3 + $0x5] sm:$0x1]
  %v272 = vld [vmem:[%s3 + $0x15] sm:$0x1]
  %273 = vrot.lane.b32.xlu0 %v269, 1
  %v274 = vpop.permute.xlu0 %273
  %v275 = vsel %vm44, %v274, -1e+30
  %276 = vrot.lane.b32.xlu0 %v269, 2
  %v277 = vpop.permute.xlu0 %276
  %v278 = vsel %vm49, %v277, -1e+30
  %v279 = vmax.f32 %v269, %v275
  %v280 = vmax.f32 %v279, %v278
  %v281 = vsub.f32 %v269, %v280
  %v282 = vmul.f32 %v281, 1.442695
  %v283 = vpow.pop %v282
  %v284 = vsub.f32 %v275, %v280
  %v285 = vmul.f32 %v284, 1.442695
  %v286 = vpow.pop %v285
  %v287 = vadd.f32 %v283, %v286
  %v288 = vsub.f32 %v278, %v280
  %v289 = vmul.f32 %v288, 1.442695
  %v290 = vpow.pop %v289
  %v291 = vadd.f32 %v287, %v290
  %v292 = vlog2.pop %v291
  %v293 = vmul.f32 %v292, 0.6931472
  %v294 = vadd.f32 %v280, %v293
  %v297 = vrot.slane %v272, 7
  %v298 = vsel %vm72, %v297, %v271
  %v300 = vadd.f32 %v294, %v298
  %v301 = vsel %vm20, %v300, -1e+30
  %p302 = scmp.ge.s32.totalorder %s270, 1
  %v303 = vstv %s270
  %vm304 = vcmp.lt.s32.totalorder %v303, %v23
  %s305 = scalar_select %p302, 1, 0
  %v306 = vstv %s305
  %vm307 = vcmp.eq.s32.totalorder %v306, 1
  %vm308 = vmand %vm307, %vm304
  %v309 = vsel %vm308, 1, 0
  %310 = vset.pattern.permute.xlu0 0
  %311 = vperm.xlu0 %310, %v309
  %v312 = vpop.permute.xlu0 %311
  %vm313 = vcmp.eq.s32.totalorder %v312, 1
  %v314 = vsel %vm313, %v301, %v269
  %s315 = sadd.s32 %s41, 6
  %v316 = vld [vmem:[%s3 + $0x6] sm:$0x1]
  %v317 = vld [vmem:[%s3 + $0x16] sm:$0x1]
  %318 = vrot.lane.b32.xlu0 %v314, 1
  %v319 = vpop.permute.xlu0 %318
  %v320 = vsel %vm44, %v319, -1e+30
  %321 = vrot.lane.b32.xlu0 %v314, 2
  %v322 = vpop.permute.xlu0 %321
  %v323 = vsel %vm49, %v322, -1e+30
  %v324 = vmax.f32 %v314, %v320
  %v325 = vmax.f32 %v324, %v323
  %v326 = vsub.f32 %v314, %v325
  %v327 = vmul.f32 %v326, 1.442695
  %v328 = vpow.pop %v327
  %v329 = vsub.f32 %v320, %v325
  %v330 = vmul.f32 %v329, 1.442695
  %v331 = vpow.pop %v330
  %v332 = vadd.f32 %v328, %v331
  %v333 = vsub.f32 %v323, %v325
  %v334 = vmul.f32 %v333, 1.442695
  %v335 = vpow.pop %v334
  %v336 = vadd.f32 %v332, %v335
  %v337 = vlog2.pop %v336
  %v338 = vmul.f32 %v337, 0.6931472
  %v339 = vadd.f32 %v325, %v338
  %v342 = vrot.slane %v317, 7
  %v343 = vsel %vm72, %v342, %v316
  %v345 = vadd.f32 %v339, %v343
  %v346 = vsel %vm20, %v345, -1e+30
  %p347 = scmp.ge.s32.totalorder %s315, 1
  %v348 = vstv %s315
  %vm349 = vcmp.lt.s32.totalorder %v348, %v23
  %s350 = scalar_select %p347, 1, 0
  %v351 = vstv %s350
  %vm352 = vcmp.eq.s32.totalorder %v351, 1
  %vm353 = vmand %vm352, %vm349
  %v354 = vsel %vm353, 1, 0
  %355 = vset.pattern.permute.xlu0 0
  %356 = vperm.xlu0 %355, %v354
  %v357 = vpop.permute.xlu0 %356
  %vm358 = vcmp.eq.s32.totalorder %v357, 1
  %v359 = vsel %vm358, %v346, %v314
  %s360 = sadd.s32 %s41, 7
  %v361 = vld [vmem:[%s3 + $0x7] sm:$0x1]
  %v362 = vld [vmem:[%s3 + $0x17] sm:$0x1]
  %363 = vrot.lane.b32.xlu0 %v359, 1
  %v364 = vpop.permute.xlu0 %363
  %v365 = vsel %vm44, %v364, -1e+30
  %366 = vrot.lane.b32.xlu0 %v359, 2
  %v367 = vpop.permute.xlu0 %366
  %v368 = vsel %vm49, %v367, -1e+30
  %v369 = vmax.f32 %v359, %v365
  %v370 = vmax.f32 %v369, %v368
  %v371 = vsub.f32 %v359, %v370
  %v372 = vmul.f32 %v371, 1.442695
  %v373 = vpow.pop %v372
  %v374 = vsub.f32 %v365, %v370
  %v375 = vmul.f32 %v374, 1.442695
  %v376 = vpow.pop %v375
  %v377 = vadd.f32 %v373, %v376
  %v378 = vsub.f32 %v368, %v370
  %v379 = vmul.f32 %v378, 1.442695
  %v380 = vpow.pop %v379
  %v381 = vadd.f32 %v377, %v380
  %v382 = vlog2.pop %v381
  %v383 = vmul.f32 %v382, 0.6931472
  %v384 = vadd.f32 %v370, %v383
  %v387 = vrot.slane %v362, 7
  %v388 = vsel %vm72, %v387, %v361
  %v390 = vadd.f32 %v384, %v388
  %v391 = vsel %vm20, %v390, -1e+30
  %p392 = scmp.ge.s32.totalorder %s360, 1
  %v393 = vstv %s360
  %vm394 = vcmp.lt.s32.totalorder %v393, %v23
  %s395 = scalar_select %p392, 1, 0
  %v396 = vstv %s395
  %vm397 = vcmp.eq.s32.totalorder %v396, 1
  %vm398 = vmand %vm397, %vm394
  %v399 = vsel %vm398, 1, 0
  %400 = vset.pattern.permute.xlu0 0
  %401 = vperm.xlu0 %400, %v399
  %v402 = vpop.permute.xlu0 %401
  %vm403 = vcmp.eq.s32.totalorder %v402, 1
  %v404 = vsel %vm403, %v391, %v359
  %s405 = sadd.s32 %s41, 8
  %v406 = vld [vmem:[%s3 + $0x8] sm:$0x1]
  %v407 = vld [vmem:[%s3 + $0x18] sm:$0x1]
  %408 = vrot.lane.b32.xlu0 %v404, 1
  %v409 = vpop.permute.xlu0 %408
  %v410 = vsel %vm44, %v409, -1e+30
  %411 = vrot.lane.b32.xlu0 %v404, 2
  %v412 = vpop.permute.xlu0 %411
  %v413 = vsel %vm49, %v412, -1e+30
  %v414 = vmax.f32 %v404, %v410
  %v415 = vmax.f32 %v414, %v413
  %v416 = vsub.f32 %v404, %v415
  %v417 = vmul.f32 %v416, 1.442695
  %v418 = vpow.pop %v417
  %v419 = vsub.f32 %v410, %v415
  %v420 = vmul.f32 %v419, 1.442695
  %v421 = vpow.pop %v420
  %v422 = vadd.f32 %v418, %v421
  %v423 = vsub.f32 %v413, %v415
  %v424 = vmul.f32 %v423, 1.442695
  %v425 = vpow.pop %v424
  %v426 = vadd.f32 %v422, %v425
  %v427 = vlog2.pop %v426
  %v428 = vmul.f32 %v427, 0.6931472
  %v429 = vadd.f32 %v415, %v428
  %v432 = vrot.slane %v407, 7
  %v433 = vsel %vm72, %v432, %v406
  %v435 = vadd.f32 %v429, %v433
  %v436 = vsel %vm20, %v435, -1e+30
  %p437 = scmp.ge.s32.totalorder %s405, 1
  %v438 = vstv %s405
  %vm439 = vcmp.lt.s32.totalorder %v438, %v23
  %s440 = scalar_select %p437, 1, 0
  %v441 = vstv %s440
  %vm442 = vcmp.eq.s32.totalorder %v441, 1
  %vm443 = vmand %vm442, %vm439
  %v444 = vsel %vm443, 1, 0
  %445 = vset.pattern.permute.xlu0 0
  %446 = vperm.xlu0 %445, %v444
  %v447 = vpop.permute.xlu0 %446
  %vm448 = vcmp.eq.s32.totalorder %v447, 1
  %v449 = vsel %vm448, %v436, %v404
  %s450 = sadd.s32 %s41, 9
  %v451 = vld [vmem:[%s3 + $0x9] sm:$0x1]
  %v452 = vld [vmem:[%s3 + $0x19] sm:$0x1]
  %453 = vrot.lane.b32.xlu0 %v449, 1
  %v454 = vpop.permute.xlu0 %453
  %v455 = vsel %vm44, %v454, -1e+30
  %456 = vrot.lane.b32.xlu0 %v449, 2
  %v457 = vpop.permute.xlu0 %456
  %v458 = vsel %vm49, %v457, -1e+30
  %v459 = vmax.f32 %v449, %v455
  %v460 = vmax.f32 %v459, %v458
  %v461 = vsub.f32 %v449, %v460
  %v462 = vmul.f32 %v461, 1.442695
  %v463 = vpow.pop %v462
  %v464 = vsub.f32 %v455, %v460
  %v465 = vmul.f32 %v464, 1.442695
  %v466 = vpow.pop %v465
  %v467 = vadd.f32 %v463, %v466
  %v468 = vsub.f32 %v458, %v460
  %v469 = vmul.f32 %v468, 1.442695
  %v470 = vpow.pop %v469
  %v471 = vadd.f32 %v467, %v470
  %v472 = vlog2.pop %v471
  %v473 = vmul.f32 %v472, 0.6931472
  %v474 = vadd.f32 %v460, %v473
  %v477 = vrot.slane %v452, 7
  %v478 = vsel %vm72, %v477, %v451
  %v480 = vadd.f32 %v474, %v478
  %v481 = vsel %vm20, %v480, -1e+30
  %p482 = scmp.ge.s32.totalorder %s450, 1
  %v483 = vstv %s450
  %vm484 = vcmp.lt.s32.totalorder %v483, %v23
  %s485 = scalar_select %p482, 1, 0
  %v486 = vstv %s485
  %vm487 = vcmp.eq.s32.totalorder %v486, 1
  %vm488 = vmand %vm487, %vm484
  %v489 = vsel %vm488, 1, 0
  %490 = vset.pattern.permute.xlu0 0
  %491 = vperm.xlu0 %490, %v489
  %v492 = vpop.permute.xlu0 %491
  %vm493 = vcmp.eq.s32.totalorder %v492, 1
  %v494 = vsel %vm493, %v481, %v449
  %s495 = sadd.s32 %s41, 10
  %v496 = vld [vmem:[%s3 + $0xa] sm:$0x1]
  %v497 = vld [vmem:[%s3 + $0x1a] sm:$0x1]
  %498 = vrot.lane.b32.xlu0 %v494, 1
  %v499 = vpop.permute.xlu0 %498
  %v500 = vsel %vm44, %v499, -1e+30
  %501 = vrot.lane.b32.xlu0 %v494, 2
  %v502 = vpop.permute.xlu0 %501
  %v503 = vsel %vm49, %v502, -1e+30
  %v504 = vmax.f32 %v494, %v500
  %v505 = vmax.f32 %v504, %v503
  %v506 = vsub.f32 %v494, %v505
  %v507 = vmul.f32 %v506, 1.442695
  %v508 = vpow.pop %v507
  %v509 = vsub.f32 %v500, %v505
  %v510 = vmul.f32 %v509, 1.442695
  %v511 = vpow.pop %v510
  %v512 = vadd.f32 %v508, %v511
  %v513 = vsub.f32 %v503, %v505
  %v514 = vmul.f32 %v513, 1.442695
  %v515 = vpow.pop %v514
  %v516 = vadd.f32 %v512, %v515
  %v517 = vlog2.pop %v516
  %v518 = vmul.f32 %v517, 0.6931472
  %v519 = vadd.f32 %v505, %v518
  %v522 = vrot.slane %v497, 7
  %v523 = vsel %vm72, %v522, %v496
  %v525 = vadd.f32 %v519, %v523
  %v526 = vsel %vm20, %v525, -1e+30
  %p527 = scmp.ge.s32.totalorder %s495, 1
  %v528 = vstv %s495
  %vm529 = vcmp.lt.s32.totalorder %v528, %v23
  %s530 = scalar_select %p527, 1, 0
  %v531 = vstv %s530
  %vm532 = vcmp.eq.s32.totalorder %v531, 1
  %vm533 = vmand %vm532, %vm529
  %v534 = vsel %vm533, 1, 0
  %535 = vset.pattern.permute.xlu0 0
  %536 = vperm.xlu0 %535, %v534
  %v537 = vpop.permute.xlu0 %536
  %vm538 = vcmp.eq.s32.totalorder %v537, 1
  %v539 = vsel %vm538, %v526, %v494
  %s540 = sadd.s32 %s41, 11
  %v541 = vld [vmem:[%s3 + $0xb] sm:$0x1]
  %v542 = vld [vmem:[%s3 + $0x1b] sm:$0x1]
  %543 = vrot.lane.b32.xlu0 %v539, 1
  %v544 = vpop.permute.xlu0 %543
  %v545 = vsel %vm44, %v544, -1e+30
  %546 = vrot.lane.b32.xlu0 %v539, 2
  %v547 = vpop.permute.xlu0 %546
  %v548 = vsel %vm49, %v547, -1e+30
  %v549 = vmax.f32 %v539, %v545
  %v550 = vmax.f32 %v549, %v548
  %v551 = vsub.f32 %v539, %v550
  %v552 = vmul.f32 %v551, 1.442695
  %v553 = vpow.pop %v552
  %v554 = vsub.f32 %v545, %v550
  %v555 = vmul.f32 %v554, 1.442695
  %v556 = vpow.pop %v555
  %v557 = vadd.f32 %v553, %v556
  %v558 = vsub.f32 %v548, %v550
  %v559 = vmul.f32 %v558, 1.442695
  %v560 = vpow.pop %v559
  %v561 = vadd.f32 %v557, %v560
  %v562 = vlog2.pop %v561
  %v563 = vmul.f32 %v562, 0.6931472
  %v564 = vadd.f32 %v550, %v563
  %v567 = vrot.slane %v542, 7
  %v568 = vsel %vm72, %v567, %v541
  %v570 = vadd.f32 %v564, %v568
  %v571 = vsel %vm20, %v570, -1e+30
  %p572 = scmp.ge.s32.totalorder %s540, 1
  %v573 = vstv %s540
  %vm574 = vcmp.lt.s32.totalorder %v573, %v23
  %s575 = scalar_select %p572, 1, 0
  %v576 = vstv %s575
  %vm577 = vcmp.eq.s32.totalorder %v576, 1
  %vm578 = vmand %vm577, %vm574
  %v579 = vsel %vm578, 1, 0
  %580 = vset.pattern.permute.xlu0 0
  %581 = vperm.xlu0 %580, %v579
  %v582 = vpop.permute.xlu0 %581
  %vm583 = vcmp.eq.s32.totalorder %v582, 1
  %v584 = vsel %vm583, %v571, %v539
  %s585 = sadd.s32 %s41, 12
  %v586 = vld [vmem:[%s3 + $0xc] sm:$0x1]
  %v587 = vld [vmem:[%s3 + $0x1c] sm:$0x1]
  %588 = vrot.lane.b32.xlu0 %v584, 1
  %v589 = vpop.permute.xlu0 %588
  %v590 = vsel %vm44, %v589, -1e+30
  %591 = vrot.lane.b32.xlu0 %v584, 2
  %v592 = vpop.permute.xlu0 %591
  %v593 = vsel %vm49, %v592, -1e+30
  %v594 = vmax.f32 %v584, %v590
  %v595 = vmax.f32 %v594, %v593
  %v596 = vsub.f32 %v584, %v595
  %v597 = vmul.f32 %v596, 1.442695
  %v598 = vpow.pop %v597
  %v599 = vsub.f32 %v590, %v595
  %v600 = vmul.f32 %v599, 1.442695
  %v601 = vpow.pop %v600
  %v602 = vadd.f32 %v598, %v601
  %v603 = vsub.f32 %v593, %v595
  %v604 = vmul.f32 %v603, 1.442695
  %v605 = vpow.pop %v604
  %v606 = vadd.f32 %v602, %v605
  %v607 = vlog2.pop %v606
  %v608 = vmul.f32 %v607, 0.6931472
  %v609 = vadd.f32 %v595, %v608
  %v612 = vrot.slane %v587, 7
  %v613 = vsel %vm72, %v612, %v586
  %v615 = vadd.f32 %v609, %v613
  %v616 = vsel %vm20, %v615, -1e+30
  %p617 = scmp.ge.s32.totalorder %s585, 1
  %v618 = vstv %s585
  %vm619 = vcmp.lt.s32.totalorder %v618, %v23
  %s620 = scalar_select %p617, 1, 0
  %v621 = vstv %s620
  %vm622 = vcmp.eq.s32.totalorder %v621, 1
  %vm623 = vmand %vm622, %vm619
  %v624 = vsel %vm623, 1, 0
  %625 = vset.pattern.permute.xlu0 0
  %626 = vperm.xlu0 %625, %v624
  %v627 = vpop.permute.xlu0 %626
  %vm628 = vcmp.eq.s32.totalorder %v627, 1
  %v629 = vsel %vm628, %v616, %v584
  %s630 = sadd.s32 %s41, 13
  %v631 = vld [vmem:[%s3 + $0xd] sm:$0x1]
  %v632 = vld [vmem:[%s3 + $0x1d] sm:$0x1]
  %633 = vrot.lane.b32.xlu0 %v629, 1
  %v634 = vpop.permute.xlu0 %633
  %v635 = vsel %vm44, %v634, -1e+30
  %636 = vrot.lane.b32.xlu0 %v629, 2
  %v637 = vpop.permute.xlu0 %636
  %v638 = vsel %vm49, %v637, -1e+30
  %v639 = vmax.f32 %v629, %v635
  %v640 = vmax.f32 %v639, %v638
  %v641 = vsub.f32 %v629, %v640
  %v642 = vmul.f32 %v641, 1.442695
  %v643 = vpow.pop %v642
  %v644 = vsub.f32 %v635, %v640
  %v645 = vmul.f32 %v644, 1.442695
  %v646 = vpow.pop %v645
  %v647 = vadd.f32 %v643, %v646
  %v648 = vsub.f32 %v638, %v640
  %v649 = vmul.f32 %v648, 1.442695
  %v650 = vpow.pop %v649
  %v651 = vadd.f32 %v647, %v650
  %v652 = vlog2.pop %v651
  %v653 = vmul.f32 %v652, 0.6931472
  %v654 = vadd.f32 %v640, %v653
  %v657 = vrot.slane %v632, 7
  %v658 = vsel %vm72, %v657, %v631
  %v660 = vadd.f32 %v654, %v658
  %v661 = vsel %vm20, %v660, -1e+30
  %p662 = scmp.ge.s32.totalorder %s630, 1
  %v663 = vstv %s630
  %vm664 = vcmp.lt.s32.totalorder %v663, %v23
  %s665 = scalar_select %p662, 1, 0
  %v666 = vstv %s665
  %vm667 = vcmp.eq.s32.totalorder %v666, 1
  %vm668 = vmand %vm667, %vm664
  %v669 = vsel %vm668, 1, 0
  %670 = vset.pattern.permute.xlu0 0
  %671 = vperm.xlu0 %670, %v669
  %v672 = vpop.permute.xlu0 %671
  %vm673 = vcmp.eq.s32.totalorder %v672, 1
  %v674 = vsel %vm673, %v661, %v629
  %s675 = sadd.s32 %s41, 14
  %v676 = vld [vmem:[%s3 + $0xe] sm:$0x1]
  %v677 = vld [vmem:[%s3 + $0x1e] sm:$0x1]
  %678 = vrot.lane.b32.xlu0 %v674, 1
  %v679 = vpop.permute.xlu0 %678
  %v680 = vsel %vm44, %v679, -1e+30
  %681 = vrot.lane.b32.xlu0 %v674, 2
  %v682 = vpop.permute.xlu0 %681
  %v683 = vsel %vm49, %v682, -1e+30
  %v684 = vmax.f32 %v674, %v680
  %v685 = vmax.f32 %v684, %v683
  %v686 = vsub.f32 %v674, %v685
  %v687 = vmul.f32 %v686, 1.442695
  %v688 = vpow.pop %v687
  %v689 = vsub.f32 %v680, %v685
  %v690 = vmul.f32 %v689, 1.442695
  %v691 = vpow.pop %v690
  %v692 = vadd.f32 %v688, %v691
  %v693 = vsub.f32 %v683, %v685
  %v694 = vmul.f32 %v693, 1.442695
  %v695 = vpow.pop %v694
  %v696 = vadd.f32 %v692, %v695
  %v697 = vlog2.pop %v696
  %v698 = vmul.f32 %v697, 0.6931472
  %v699 = vadd.f32 %v685, %v698
  %v702 = vrot.slane %v677, 7
  %v703 = vsel %vm72, %v702, %v676
  %v705 = vadd.f32 %v699, %v703
  %v706 = vsel %vm20, %v705, -1e+30
  %p707 = scmp.ge.s32.totalorder %s675, 1
  %v708 = vstv %s675
  %vm709 = vcmp.lt.s32.totalorder %v708, %v23
  %s710 = scalar_select %p707, 1, 0
  %v711 = vstv %s710
  %vm712 = vcmp.eq.s32.totalorder %v711, 1
  %vm713 = vmand %vm712, %vm709
  %v714 = vsel %vm713, 1, 0
  %715 = vset.pattern.permute.xlu0 0
  %716 = vperm.xlu0 %715, %v714
  %v717 = vpop.permute.xlu0 %716
  %vm718 = vcmp.eq.s32.totalorder %v717, 1
  %v719 = vsel %vm718, %v706, %v674
  %s720 = sadd.s32 %s41, 15
  %v721 = vld [vmem:[%s3 + $0xf] sm:$0x1]
  %v722 = vld [vmem:[%s3 + $0x1f] sm:$0x1]
  %723 = vrot.lane.b32.xlu0 %v719, 1
  %v724 = vpop.permute.xlu0 %723
  %v725 = vsel %vm44, %v724, -1e+30
  %726 = vrot.lane.b32.xlu0 %v719, 2
  %v727 = vpop.permute.xlu0 %726
  %v728 = vsel %vm49, %v727, -1e+30
  %v729 = vmax.f32 %v719, %v725
  %v730 = vmax.f32 %v729, %v728
  %v731 = vsub.f32 %v719, %v730
  %v732 = vmul.f32 %v731, 1.442695
  %v733 = vpow.pop %v732
  %v734 = vsub.f32 %v725, %v730
  %v735 = vmul.f32 %v734, 1.442695
  %v736 = vpow.pop %v735
  %v737 = vadd.f32 %v733, %v736
  %v738 = vsub.f32 %v728, %v730
  %v739 = vmul.f32 %v738, 1.442695
  %v740 = vpow.pop %v739
  %v741 = vadd.f32 %v737, %v740
  %v742 = vlog2.pop %v741
  %v743 = vmul.f32 %v742, 0.6931472
  %v744 = vadd.f32 %v730, %v743
  %v747 = vrot.slane %v722, 7
  %v748 = vsel %vm72, %v747, %v721
  %v750 = vadd.f32 %v744, %v748
  %v751 = vsel %vm20, %v750, -1e+30
  %p752 = scmp.ge.s32.totalorder %s720, 1
  %v753 = vstv %s720
  %vm754 = vcmp.lt.s32.totalorder %v753, %v23
  %s755 = scalar_select %p752, 1, 0
  %v756 = vstv %s755
  %vm757 = vcmp.eq.s32.totalorder %v756, 1
  %vm758 = vmand %vm757, %vm754
  %v759 = vsel %vm758, 1, 0
  %760 = vset.pattern.permute.xlu0 0
  %761 = vperm.xlu0 %760, %v759
  %v762 = vpop.permute.xlu0 %761
  %vm763 = vcmp.eq.s32.totalorder %v762, 1
  %v764 = vsel %vm763, %v751, %v719
  %765 = vst [vmem:[%s4] sm:$0x3] %v764
  // Predicated region
  $region22: #{cat_model_forward.3} parent=0 // pred_check
    _
  $region23: #{cat_model_forward.3} parent=0 // pred_check_branch
    %767 = sbr.rel (0) target = $region25
  $region24: #{cat_model_forward.3} parent=0 // pred_region
    _
  $region25: #{cat_model_forward.3} parent=0 // pred_fallthru
    _
  // Predicated region
  $region26: #{cat_model_forward.3} parent=0 // pred_check
    _
  $region27: #{cat_model_forward.3} parent=0 // pred_check_branch
    %769 = sbr.rel (0) target = $region29
  $region28: #{cat_model_forward.3} parent=0 // pred_region
    _
  $region29: #{cat_model_forward.3} parent=0 // pred_fallthru
    _

// kernel: cat_model_forward.2
$region0: #{cat_model_forward.2}
  #allocation0 [shape = 'u32[]', space=smem, size = 0x4, offset = 0x4, fixed_abs, tag = 'smem constant byte address 0x4 - core index']
  #allocation1 [shape = 'u32[144,128]{1,0:T(1,128)}', space=vmem, size = 0x12000, scoped, tag = 'internal scratch']
  #allocation2 [shape = 'f32[16,1]{1,0:T(8,128)}', space=vmem, size = 0x2000, scoped, tag = 'scratch operand']
  #allocation3 [shape = 'f32[16,1]{1,0:T(8,128)}', space=vmem, size = 0x2000, scoped, tag = 'scratch operand']
  %s0 = inlined_call_operand.vmem [shape: bf16[2,16,128], index: 0, kind: input, shape index: {}]
  %s1 = inlined_call_operand.vmem [shape: bf16[128,128], index: 1, kind: input, shape index: {}]
  %s2 = inlined_call_operand.vmem [shape: f32[1,128], index: 2, kind: input, shape index: {}]
  %s3 = inlined_call_operand.vmem [shape: bf16[2,128,128], index: 3, kind: input, shape index: {}]
  %s4 = inlined_call_operand.vmem [shape: f32[2,1,128], index: 4, kind: input, shape index: {}]
  %s5 = inlined_call_operand.vmem [shape: f32[2,16,128], index: 5, kind: output, shape index: {}]
  %s6 = sld [smem:[#allocation0]]
  $region61: #{cat_model_forward.2} parent=0
    _
  %s8 = ssub.s32 1, %s6
  %s9 = scalar_select 0, %s8, %s6
  loop: start=0, step=1, limit=4
  $region2: #{cat_model_forward.2} parent=0 // loop_pre_header
    _
  $region3: #{cat_model_forward.2} parent=0 // loop_header
    %s11 = sphi 0, %s15
    %p12 = scmp.ge.s32.totalorder %s11, 4
    %s18 = sphi 0, %s37
    %s19 = sphi 0, %s33
    %s20 = sphi 0, %s29
    %s21 = sphi 0, %s18
    %s22 = sphi 0, %s19
    %s23 = sphi 0, %s20
    %s24 = sphi 0, %s21
    %s25 = sphi 0, %s22
    %s26 = sphi 0, %s23
    %s42 = sphi 0, %s44
    %s45 = sphi 0, %s42
    %s46 = sphi 0, %s45
    %s62 = sphi 0, %s46
    %s68 = sphi 0, %s70
    %s71 = sphi 0, %s68
    %s72 = sphi 0, %s71
    %s88 = sphi 0, %s72
    %s94 = sphi 0, %s96
    %s97 = sphi 0, %s94
    %s98 = sphi 0, %s97
    %s114 = sphi 0, %s98
    %s120 = sphi 0, %s122
    %s123 = sphi 0, %s120
    %s124 = sphi 0, %s123
    %s140 = sphi 0, %s124
    %s146 = sphi 0, %s148
    %s149 = sphi 0, %s146
    %s150 = sphi 0, %s149
    %s166 = sphi 0, %s150
    %s174 = sphi 0, %s176
    %s177 = sphi 0, %s174
    %s178 = sphi 0, %s177
    %s194 = sphi 0, %s178
  $region4: #{cat_model_forward.2} parent=0 // loop_header_branch
    %14 = sbr.rel (%p12) target = $region8
  $region5: #{cat_model_forward.2} parent=0 // loop_body
    %s16 = ssub.s32 %s11, 1
    %s17 = ssub.s32 %s11, 2
    %s27 = sadd.s32 1, %s20
    %p28 = scmp.ge.s32.totalorder %s27, 1
    %s29 = scalar_select %p28, 0, %s27
    %s30 = sadd.s32 1, %s19
    %s31 = scalar_select %p28, %s30, %s19
    %p32 = scmp.ge.s32.totalorder %s31, 1
    %s33 = scalar_select %p32, 0, %s31
    %s34 = sadd.s32 1, %s18
    %s35 = scalar_select %p32, %s34, %s18
    %p36 = scmp.ge.s32.totalorder %s35, 2
    %s37 = scalar_select %p36, 0, %s35
    %s38 = ssub.s32 %s18, %s37
    %s39 = ssub.s32 %s19, %s33
    %s40 = sor.u32 %s38, %s39
    %p41 = scmp.eq.s32.totalorder %s40, 0
    %s43 = sadd.s32 %s42, 1
    %s44 = scalar_select %p41, %s42, %s43
    %p47 = pneg %p41
    %p48 = scmp.eq.s32.totalorder %s11, 1
    %p49 = por %p47, %p48
    %p50 = scmp.ne.s32.totalorder %s42, %s45
    %p51 = scmp.eq.s32.totalorder %s11, 0
    %p52 = por %p50, %p51
    %p53 = scmp.ne.s32.totalorder %s42, %s45
    %p54 = scmp.eq.s32.totalorder %s16, 1
    %p55 = por %p53, %p54
    %p56 = scmp.ne.s32.totalorder %s45, %s46
    %p57 = scmp.eq.s32.totalorder %s16, 0
    %p58 = por %p56, %p57
    %p59 = scmp.ne.s32.totalorder %s45, %s46
    %p60 = scmp.eq.s32.totalorder %s17, 1
    %p61 = por %p59, %p60
    %p63 = scmp.ne.s32.totalorder %s46, %s62
    %p64 = scmp.eq.s32.totalorder %s17, 0
    %p65 = por %p63, %p64
    %s66 = ssub.s32 %s20, %s29
    %p67 = scmp.eq.s32.totalorder %s66, 0
    %s69 = sadd.s32 %s68, 1
    %s70 = scalar_select %p67, %s68, %s69
    %p73 = pneg %p67
    %p74 = scmp.eq.s32.totalorder %s11, 1
    %p75 = por %p73, %p74
    %p76 = scmp.ne.s32.totalorder %s68, %s71
    %p77 = scmp.eq.s32.totalorder %s11, 0
    %p78 = por %p76, %p77
    %p79 = scmp.ne.s32.totalorder %s68, %s71
    %p80 = scmp.eq.s32.totalorder %s16, 1
    %p81 = por %p79, %p80
    %p82 = scmp.ne.s32.totalorder %s71, %s72
    %p83 = scmp.eq.s32.totalorder %s16, 0
    %p84 = por %p82, %p83
    %p85 = scmp.ne.s32.totalorder %s71, %s72
    %p86 = scmp.eq.s32.totalorder %s17, 1
    %p87 = por %p85, %p86
    %p89 = scmp.ne.s32.totalorder %s72, %s88
    %p90 = scmp.eq.s32.totalorder %s17, 0
    %p91 = por %p89, %p90
    %s92 = ssub.s32 %s20, %s29
    %p93 = scmp.eq.s32.totalorder %s92, 0
    %s95 = sadd.s32 %s94, 1
    %s96 = scalar_select %p93, %s94, %s95
    %p99 = pneg %p93
    %p100 = scmp.eq.s32.totalorder %s11, 1
    %p101 = por %p99, %p100
    %p102 = scmp.ne.s32.totalorder %s94, %s97
    %p103 = scmp.eq.s32.totalorder %s11, 0
    %p104 = por %p102, %p103
    %p105 = scmp.ne.s32.totalorder %s94, %s97
    %p106 = scmp.eq.s32.totalorder %s16, 1
    %p107 = por %p105, %p106
    %p108 = scmp.ne.s32.totalorder %s97, %s98
    %p109 = scmp.eq.s32.totalorder %s16, 0
    %p110 = por %p108, %p109
    %p111 = scmp.ne.s32.totalorder %s97, %s98
    %p112 = scmp.eq.s32.totalorder %s17, 1
    %p113 = por %p111, %p112
    %p115 = scmp.ne.s32.totalorder %s98, %s114
    %p116 = scmp.eq.s32.totalorder %s17, 0
    %p117 = por %p115, %p116
    %s118 = ssub.s32 %s18, %s37
    %p119 = scmp.eq.s32.totalorder %s118, 0
    %s121 = sadd.s32 %s120, 1
    %s122 = scalar_select %p119, %s120, %s121
    %p125 = pneg %p119
    %p126 = scmp.eq.s32.totalorder %s11, 1
    %p127 = por %p125, %p126
    %p128 = scmp.ne.s32.totalorder %s120, %s123
    %p129 = scmp.eq.s32.totalorder %s11, 0
    %p130 = por %p128, %p129
    %p131 = scmp.ne.s32.totalorder %s120, %s123
    %p132 = scmp.eq.s32.totalorder %s16, 1
    %p133 = por %p131, %p132
    %p134 = scmp.ne.s32.totalorder %s123, %s124
    %p135 = scmp.eq.s32.totalorder %s16, 0
    %p136 = por %p134, %p135
    %p137 = scmp.ne.s32.totalorder %s123, %s124
    %p138 = scmp.eq.s32.totalorder %s17, 1
    %p139 = por %p137, %p138
    %p141 = scmp.ne.s32.totalorder %s124, %s140
    %p142 = scmp.eq.s32.totalorder %s17, 0
    %p143 = por %p141, %p142
    %s144 = ssub.s32 %s18, %s37
    %p145 = scmp.eq.s32.totalorder %s144, 0
    %s147 = sadd.s32 %s146, 1
    %s148 = scalar_select %p145, %s146, %s147
    %p151 = pneg %p145
    %p152 = scmp.eq.s32.totalorder %s11, 1
    %p153 = por %p151, %p152
    %p154 = scmp.ne.s32.totalorder %s146, %s149
    %p155 = scmp.eq.s32.totalorder %s11, 0
    %p156 = por %p154, %p155
    %p157 = scmp.ne.s32.totalorder %s146, %s149
    %p158 = scmp.eq.s32.totalorder %s16, 1
    %p159 = por %p157, %p158
    %p160 = scmp.ne.s32.totalorder %s149, %s150
    %p161 = scmp.eq.s32.totalorder %s16, 0
    %p162 = por %p160, %p161
    %p163 = scmp.ne.s32.totalorder %s149, %s150
    %p164 = scmp.eq.s32.totalorder %s17, 1
    %p165 = por %p163, %p164
    %p167 = scmp.ne.s32.totalorder %s150, %s166
    %p168 = scmp.eq.s32.totalorder %s17, 0
    %p169 = por %p167, %p168
    %s170 = ssub.s32 %s18, %s37
    %s171 = ssub.s32 %s19, %s33
    %s172 = sor.u32 %s170, %s171
    %p173 = scmp.eq.s32.totalorder %s172, 0
    %s175 = sadd.s32 %s174, 1
    %s176 = scalar_select %p173, %s174, %s175
    %p179 = pneg %p173
    %p180 = scmp.eq.s32.totalorder %s11, 1
    %p181 = por %p179, %p180
    %p182 = scmp.ne.s32.totalorder %s174, %s177
    %p183 = scmp.eq.s32.totalorder %s11, 0
    %p184 = por %p182, %p183
    %p185 = scmp.ne.s32.totalorder %s174, %s177
    %p186 = scmp.eq.s32.totalorder %s16, 1
    %p187 = por %p185, %p186
    %p188 = scmp.ne.s32.totalorder %s177, %s178
    %p189 = scmp.eq.s32.totalorder %s16, 0
    %p190 = por %p188, %p189
    %p191 = scmp.ne.s32.totalorder %s177, %s178
    %p192 = scmp.eq.s32.totalorder %s17, 1
    %p193 = por %p191, %p192
    %p195 = scmp.ne.s32.totalorder %s178, %s194
    %p196 = scmp.eq.s32.totalorder %s17, 0
    %p197 = por %p195, %p196
    %p198 = scmp.le.s32.totalorder 1, %s11
    %p199 = scmp.lt.s32.totalorder %s11, 3
    %p200 = pnand %p198, %p199
    %p201 = pneg %p200
    // Predicated region
    $region9: #{cat_model_forward.2} parent=5 // pred_check
      _
    $region10: #{cat_model_forward.2} parent=5 // pred_check_branch
      %203 = sbr.rel (%p200) target = $region12
    $region11: #{cat_model_forward.2} parent=5 // pred_region
      %s204 = ssub.s32 %s11, 1
      // Predicated region
      $region13: #{cat_model_forward.2} parent=11 // pred_check
        %p205 = pneg %p84
      $region14: #{cat_model_forward.2} parent=11 // pred_check_branch
        %207 = sbr.rel (%p205) target = $region16
      $region15: #{cat_model_forward.2} parent=11 // pred_region
        %p208 = scmp.lt.s32.totalorder %s23, 0
        %s209 = scalar_select %p208, %s23, 0
        %s210 = smul.addr %s209, 4
        %s211 = scalar_lea.vmem %s1, %s210
      $region16: #{cat_model_forward.2} parent=11 // pred_fallthru
        _
      // Predicated region
      $region17: #{cat_model_forward.2} parent=11 // pred_check
        %p212 = pneg %p110
      $region18: #{cat_model_forward.2} parent=11 // pred_check_branch
        %214 = sbr.rel (%p212) target = $region20
      $region19: #{cat_model_forward.2} parent=11 // pred_region
        %p215 = scmp.lt.s32.totalorder %s23, 0
        %s216 = scalar_select %p215, %s23, 0
        %s217 = scalar_lea.vmem %s2, %s216
      $region20: #{cat_model_forward.2} parent=11 // pred_fallthru
        _
    $region12: #{cat_model_forward.2} parent=5 // pred_fallthru
      _
    %p218 = scmp.lt.s32.totalorder %s11, 2
    // Predicated region
    $region21: #{cat_model_forward.2} parent=5 // pred_check
      %p219 = pneg %p218
    $region22: #{cat_model_forward.2} parent=5 // pred_check_branch
      %221 = sbr.rel (%p219) target = $region24
    $region23: #{cat_model_forward.2} parent=5 // pred_region
      // Predicated region
      $region25: #{cat_model_forward.2} parent=23 // pred_check
        %p222 = pneg %p52
      $region26: #{cat_model_forward.2} parent=23 // pred_check_branch
        %224 = sbr.rel (%p222) target = $region28
      $region27: #{cat_model_forward.2} parent=23 // pred_region
        %s225 = smul.u32 2, %s19
        %p226 = scmp.lt.s32.totalorder %s18, 1
        %s227 = scalar_select %p226, %s18, 1
        %p228 = scmp.lt.s32.totalorder %s225, 1
        %s229 = scalar_select %p228, %s225, 1
        %s230 = smul.addr %s227, 2
        %s231 = sadd.s32 %s229, %s230
        %s232 = smul.addr %s231, 4
        %s233 = scalar_lea.vmem %s0, %s232
        %s234 = smul.u32 2, %s19
      $region28: #{cat_model_forward.2} parent=23 // pred_fallthru
        _
      // Predicated region
      $region29: #{cat_model_forward.2} parent=23 // pred_check
        %p235 = pneg %p130
      $region30: #{cat_model_forward.2} parent=23 // pred_check_branch
        %237 = sbr.rel (%p235) target = $region32
      $region31: #{cat_model_forward.2} parent=23 // pred_region
        %p238 = scmp.lt.s32.totalorder %s18, 1
        %s239 = scalar_select %p238, %s18, 1
        %s240 = smul.addr %s239, 16
        %s241 = smul.addr %s240, 4
        %s242 = scalar_lea.vmem %s3, %s241
      $region32: #{cat_model_forward.2} parent=23 // pred_fallthru
        _
      // Predicated region
      $region33: #{cat_model_forward.2} parent=23 // pred_check
        %p243 = pneg %p156
      $region34: #{cat_model_forward.2} parent=23 // pred_check_branch
        %245 = sbr.rel (%p243) target = $region36
      $region35: #{cat_model_forward.2} parent=23 // pred_region
        %p246 = scmp.lt.s32.totalorder %s18, 1
        %s247 = scalar_select %p246, %s18, 1
        %s248 = scalar_lea.vmem %s4, %s247
      $region36: #{cat_model_forward.2} parent=23 // pred_fallthru
        _
    $region24: #{cat_model_forward.2} parent=5 // pred_fallthru
      _
    %p249 = scmp.le.s32.totalorder 1, %s11
    %p250 = scmp.lt.s32.totalorder %s11, 3
    %p251 = pnand %p249, %p250
    %p252 = pneg %p251
    // Predicated region
    $region37: #{cat_model_forward.2} parent=5 // pred_check
      _
    $region38: #{cat_model_forward.2} parent=5 // pred_check_branch
      %254 = sbr.rel (%p251) target = $region40
    $region39: #{cat_model_forward.2} parent=5 // pred_region
      %s255 = ssub.s32 %s11, 1
      %s256 = smul.u32 2, %s22
      %p257 = scmp.lt.s32.totalorder %s21, 1
      %s258 = scalar_select %p257, %s21, 1
      %p259 = scmp.lt.s32.totalorder %s256, 1
      %s260 = scalar_select %p259, %s256, 1
      %s261 = smul.addr %s258, 2
      %s262 = sadd.s32 %s260, %s261
      %s263 = smul.addr %s262, 4
      %s264 = scalar_lea.vmem %s0, %s263
      %p265 = pneg %p58
      %p266 = pneg %p55
      %p267 = scmp.lt.s32.totalorder %s23, 0
      %s268 = scalar_select %p267, %s23, 0
      %s269 = smul.addr %s268, 4
      %s270 = scalar_lea.vmem %s1, %s269
      %p271 = pneg %p84
      %p272 = pneg %p81
      %p273 = scmp.lt.s32.totalorder %s23, 0
      %s274 = scalar_select %p273, %s23, 0
      %s275 = scalar_lea.vmem %s2, %s274
      %p276 = pneg %p110
      %p277 = pneg %p107
      %p278 = scmp.lt.s32.totalorder %s21, 1
      %s279 = scalar_select %p278, %s21, 1
      %s280 = smul.addr %s279, 16
      %s281 = smul.addr %s280, 4
      %s282 = scalar_lea.vmem %s3, %s281
      %p283 = pneg %p136
      %p284 = pneg %p133
      %p285 = scmp.lt.s32.totalorder %s21, 1
      %s286 = scalar_select %p285, %s21, 1
      %s287 = scalar_lea.vmem %s4, %s286
      %p288 = pneg %p162
      %p289 = pneg %p159
      %p290 = pneg %p190
      %p291 = pneg %p187
      %s292 = smul.u32 2, %s22
      %p293 = scmp.lt.s32.totalorder %s21, 1
      %s294 = scalar_select %p293, %s21, 1
      %p295 = scmp.lt.s32.totalorder %s292, 1
      %s296 = scalar_select %p295, %s292, 1
      %s297 = smul.addr %s294, 2
      %s298 = sadd.s32 %s296, %s297
      %s299 = smul.addr %s298, 8
      %s300 = scalar_lea.vmem %s5, %s299
      %s301 = smul.u32 2, %s22
      %p302 = scmp.lt.s32.totalorder %s21, 1
      %s303 = scalar_select %p302, %s21, 1
      %p304 = scmp.lt.s32.totalorder %s301, 1
      %s305 = scalar_select %p304, %s301, 1
      %s306 = smul.addr %s303, 2
      %s307 = sadd.s32 %s305, %s306
      %s308 = smul.addr %s307, 4
      %s309 = scalar_lea.vmem %s0, %s308
      %s310 = smul.u32 2, %s22
      %p311 = scmp.lt.s32.totalorder %s23, 0
      %s312 = scalar_select %p311, %s23, 0
      %s313 = smul.addr %s312, 4
      %s314 = scalar_lea.vmem %s1, %s313
      %p315 = scmp.lt.s32.totalorder %s23, 0
      %s316 = scalar_select %p315, %s23, 0
      %s317 = scalar_lea.vmem %s2, %s316
      %p318 = scmp.lt.s32.totalorder %s21, 1
      %s319 = scalar_select %p318, %s21, 1
      %s320 = smul.addr %s319, 16
      %s321 = smul.addr %s320, 4
      %s322 = scalar_lea.vmem %s3, %s321
      %p323 = scmp.lt.s32.totalorder %s21, 1
      %s324 = scalar_select %p323, %s21, 1
      %s325 = scalar_lea.vmem %s4, %s324
      %s326 = smul.u32 2, %s22
      %p327 = scmp.lt.s32.totalorder %s21, 1
      %s328 = scalar_select %p327, %s21, 1
      %p329 = scmp.lt.s32.totalorder %s326, 1
      %s330 = scalar_select %p329, %s326, 1
      %s331 = smul.addr %s328, 2
      %s332 = sadd.s32 %s330, %s331
      %s333 = smul.addr %s332, 8
      %s334 = scalar_lea.vmem %s5, %s333
      %s335 = smul.u32 2, %s22
      %v337 = vld [vmem:[%s309] sm:$0xf]
      %v338 = vld [vmem:[%s309 + $0x4] sm:$0xf]
      %v339 = vld [vmem:[%s314] sm:$0xf]
      %v340 = vld [vmem:[%s314 + $0x4] sm:$0xf]
      %v341 = vld [vmem:[%s314 + $0x8] sm:$0xf]
      %v342 = vld [vmem:[%s314 + $0xc] sm:$0xf]
      %v343 = vld [vmem:[%s314 + $0x10] sm:$0xf]
      %v344 = vld [vmem:[%s314 + $0x14] sm:$0xf]
      %v345 = vld [vmem:[%s314 + $0x18] sm:$0xf]
      %v346 = vld [vmem:[%s314 + $0x1c] sm:$0xf]
      %v347 = vld [vmem:[%s314 + $0x20] sm:$0xf]
      %v348 = vld [vmem:[%s314 + $0x24] sm:$0xf]
      %v349 = vld [vmem:[%s314 + $0x28] sm:$0xf]
      %v350 = vld [vmem:[%s314 + $0x2c] sm:$0xf]
      %v351 = vld [vmem:[%s314 + $0x30] sm:$0xf]
      %v352 = vld [vmem:[%s314 + $0x34] sm:$0xf]
      %v353 = vld [vmem:[%s314 + $0x38] sm:$0xf]
      %v354 = vld [vmem:[%s314 + $0x3c] sm:$0xf]
      %v355 = vld [vmem:[%s317] sm:$0x1]
      %v357 = vlaneseq
      %v358 = vshrl.u32 %v357, 7
      %v359 = vsub.s32 0, %v358
      %v360 = vrot.slane %v355, %v359
      %v364 = vunpack.c.l.b16 %v337
      %v365 = vunpack.c.l.b16 %v338
      %v366 = vpack.c.b16 %v365, %v364
      %v384 = vunpack.c.l.b16 %v339
      %v385 = vunpack.c.l.b16 %v340
      %v386 = vunpack.c.l.b16 %v341
      %v387 = vunpack.c.l.b16 %v342
      %v388 = vunpack.c.l.b16 %v343
      %v389 = vunpack.c.l.b16 %v344
      %v390 = vunpack.c.l.b16 %v345
      %v391 = vunpack.c.l.b16 %v346
      %v392 = vunpack.c.l.b16 %v347
      %v393 = vunpack.c.l.b16 %v348
      %v394 = vunpack.c.l.b16 %v349
      %v395 = vunpack.c.l.b16 %v350
      %v396 = vunpack.c.l.b16 %v351
      %v397 = vunpack.c.l.b16 %v352
      %v398 = vunpack.c.l.b16 %v353
      %v399 = vunpack.c.l.b16 %v354
      %v400 = vpack.c.b16 %v385, %v384
      %v401 = vpack.c.b16 %v387, %v386
      %v402 = vpack.c.b16 %v389, %v388
      %v403 = vpack.c.b16 %v391, %v390
      %v404 = vpack.c.b16 %v393, %v392
      %v405 = vpack.c.b16 %v395, %v394
      %v406 = vpack.c.b16 %v397, %v396
      %v407 = vpack.c.b16 %v399, %v398
      %416 = vmatprep.subr.bf16.mxu0 0
      %417 = vmatpush1.bf16.msra.mxu0 %v400
      %418 = vmatprep.subr.bf16.mxu0 0
      %419 = vmatpush1.bf16.msra.mxu0 %v401
      %420 = vmatprep.subr.bf16.mxu0 0
      %421 = vmatpush1.bf16.msra.mxu0 %v402
      %422 = vmatprep.subr.bf16.mxu0 0
      %423 = vmatpush1.bf16.msra.mxu0 %v403
      %424 = vmatprep.subr.bf16.mxu0 0
      %425 = vmatpush1.bf16.msra.mxu0 %v404
      %426 = vmatprep.subr.bf16.mxu0 0
      %427 = vmatpush1.bf16.msra.mxu0 %v405
      %428 = vmatprep.subr.bf16.mxu0 0
      %429 = vmatpush1.bf16.msra.mxu0 %v406
      %430 = vmatprep.subr.bf16.mxu0 0
      %431 = vmatpush1.bf16.msra.mxu0 %v407
      %432 = vmatprep.subr.bf16.mxu0 0
      %433 = vmatpush1.bf16.msra.mxu0 0
      %434 = vmatprep.subr.bf16.mxu0 0
      %435 = vmatpush1.bf16.msra.mxu0 0
      %436 = vmatprep.subr.bf16.mxu0 0
      %437 = vmatpush1.bf16.msra.mxu0 0
      %438 = vmatprep.subr.bf16.mxu0 0
      %439 = vmatpush1.bf16.msra.mxu0 0
      %440 = vmatprep.subr.bf16.mxu0 0
      %441 = vmatpush1.bf16.msra.mxu0 0
      %442 = vmatprep.subr.bf16.mxu0 0
      %443 = vmatpush1.bf16.msra.mxu0 0
      %444 = vmatprep.subr.bf16.mxu0 0
      %445 = vmatpush1.bf16.msra.mxu0 0
      %446 = vmatprep.subr.bf16.mxu0 0
      %447 = vmatpush1.bf16.msra.mxu0 0
      %448 = vmatprep.mubr.bf16.mxu0 0
      %449 = vmatmul.mubr.bf16.gmra.mrb[0].mxu0 %v366
      %v450 = vpop.f32.mrb[0].mxu0
      %v451 = vadd.f32 %v360, %v450
      %v452 = vpop.f32.mrb[0].mxu0
      %v453 = vpop.f32.mrb[0].mxu0
      %v454 = vadd.f32 %v360, %v453
      %v455 = vpop.f32.mrb[0].mxu0
      %456 = vdwg.mxu0
      %457 = vmax.xlane.f32.xlu0 %v451
      %v458 = vpop.xlane.xlu0 %457
      %459 = vmax.xlane.f32.xlu0 %v454
      %v460 = vpop.xlane.xlu0 %459
      %p461 = scmp.eq.s32.totalorder %s23, 0
      // Predicated region
      $region41: #{cat_model_forward.2} parent=39 // pred_check
        %p462 = pneg %p461
      $region42: #{cat_model_forward.2} parent=39 // pred_check_branch
        %464 = sbr.rel (%p462) target = $region44
      $region43: #{cat_model_forward.2} parent=39 // pred_region
        %vm465 = vcmask 7168
        %466 = vst.msk [vmem:[#allocation2] sm:$0xff] %vm465, -1e+30
        %467 = vst.msk [vmem:[#allocation2 + $0x8] sm:$0xff] %vm465, -1e+30
        %468 = vst.msk [vmem:[#allocation3] sm:$0xff] %vm465, 0.0
        %469 = vst.msk [vmem:[#allocation3 + $0x8] sm:$0xff] %vm465, 0.0
      $region44: #{cat_model_forward.2} parent=39 // pred_fallthru
        _
      %v470 = vld [vmem:[#allocation2] sm:$0xff]
      %v471 = vld [vmem:[#allocation2 + $0x8] sm:$0xff]
      %v472 = vmax.f32 %v470, %v458
      %v473 = vmax.f32 %v471, %v460
      %v474 = vld [vmem:[#allocation3] sm:$0xff]
      %v475 = vld [vmem:[#allocation3 + $0x8] sm:$0xff]
      %v476 = vsub.f32 %v470, %v472
      %v477 = vsub.f32 %v471, %v473
      %v478 = vmul.f32 %v476, 1.442695
      %v479 = vpow.pop %v478
      %v480 = vmul.f32 %v477, 1.442695
      %v481 = vpow.pop %v480
      %v482 = vmul.f32 %v474, %v479
      %v483 = vmul.f32 %v475, %v481
      %485 = vset.pattern.permute.xlu0 0
      %486 = vperm.xlu0 %485, %v472
      %v487 = vpop.permute.xlu0 %486
      %490 = vset.pattern.permute.xlu0 0
      %491 = vperm.xlu0 %490, %v473
      %v492 = vpop.permute.xlu0 %491
      %v494 = vsub.f32 %v451, %v487
      %v495 = vsub.f32 %v454, %v492
      %v496 = vmul.f32 %v494, 1.442695
      %v497 = vpow.pop %v496
      %v498 = vmul.f32 %v495, 1.442695
      %v499 = vpow.pop %v498
      %500 = vadd.xlane.f32.xlu0 %v497
      %v501 = vpop.xlane.xlu0 %500
      %502 = vadd.xlane.f32.xlu0 %v499
      %v503 = vpop.xlane.xlu0 %502
      %v504 = vadd.f32 %v482, %v501
      %v505 = vadd.f32 %v483, %v503
      %vm506 = vcmask 7168
      %507 = vst.msk [vmem:[#allocation3] sm:$0xff] %vm506, %v504
      %508 = vst.msk [vmem:[#allocation3 + $0x8] sm:$0xff] %vm506, %v505
      %509 = vst.msk [vmem:[#allocation2] sm:$0xff] %vm506, %v472
      %510 = vst.msk [vmem:[#allocation2 + $0x8] sm:$0xff] %vm506, %v473
      // Predicated region
      $region45: #{cat_model_forward.2} parent=39 // pred_check
        %p511 = pneg %p461
      $region46: #{cat_model_forward.2} parent=39 // pred_check_branch
        %513 = sbr.rel (%p511) target = $region48
      $region47: #{cat_model_forward.2} parent=39 // pred_region
        %v514 = vld [vmem:[#allocation2] sm:$0xff]
        %v515 = vld [vmem:[#allocation2 + $0x8] sm:$0xff]
        %v516 = vld [vmem:[#allocation3] sm:$0xff]
        %v517 = vld [vmem:[#allocation3 + $0x8] sm:$0xff]
        %v518 = vlog2.pop %v516
        %v519 = vmul.f32 %v518, 0.6931472
        %v520 = vlog2.pop %v517
        %v521 = vmul.f32 %v520, 0.6931472
        %v522 = vadd.f32 %v514, %v519
        %v523 = vadd.f32 %v515, %v521
        %v524 = vld [vmem:[%s309] sm:$0xf]
        %v525 = vld [vmem:[%s309 + $0x4] sm:$0xf]
        %v526 = vld [vmem:[%s322] sm:$0xf]
        %v527 = vld [vmem:[%s322 + $0x4] sm:$0xf]
        %v528 = vld [vmem:[%s322 + $0x8] sm:$0xf]
        %v529 = vld [vmem:[%s322 + $0xc] sm:$0xf]
        %v530 = vld [vmem:[%s322 + $0x10] sm:$0xf]
        %v531 = vld [vmem:[%s322 + $0x14] sm:$0xf]
        %v532 = vld [vmem:[%s322 + $0x18] sm:$0xf]
        %v533 = vld [vmem:[%s322 + $0x1c] sm:$0xf]
        %v534 = vld [vmem:[%s322 + $0x20] sm:$0xf]
        %v535 = vld [vmem:[%s322 + $0x24] sm:$0xf]
        %v536 = vld [vmem:[%s322 + $0x28] sm:$0xf]
        %v537 = vld [vmem:[%s322 + $0x2c] sm:$0xf]
        %v538 = vld [vmem:[%s322 + $0x30] sm:$0xf]
        %v539 = vld [vmem:[%s322 + $0x34] sm:$0xf]
        %v540 = vld [vmem:[%s322 + $0x38] sm:$0xf]
        %v541 = vld [vmem:[%s322 + $0x3c] sm:$0xf]
        %v542 = vld [vmem:[%s325] sm:$0x1]
        %v544 = vlaneseq
        %v545 = vshrl.u32 %v544, 7
        %v546 = vsub.s32 0, %v545
        %v547 = vrot.slane %v542, %v546
        %v551 = vunpack.c.l.b16 %v524
        %v552 = vunpack.c.l.b16 %v525
        %v553 = vpack.c.b16 %v552, %v551
        %v571 = vunpack.c.l.b16 %v526
        %v572 = vunpack.c.l.b16 %v527
        %v573 = vunpack.c.l.b16 %v528
        %v574 = vunpack.c.l.b16 %v529
        %v575 = vunpack.c.l.b16 %v530
        %v576 = vunpack.c.l.b16 %v531
        %v577 = vunpack.c.l.b16 %v532
        %v578 = vunpack.c.l.b16 %v533
        %v579 = vunpack.c.l.b16 %v534
        %v580 = vunpack.c.l.b16 %v535
        %v581 = vunpack.c.l.b16 %v536
        %v582 = vunpack.c.l.b16 %v537
        %v583 = vunpack.c.l.b16 %v538
        %v584 = vunpack.c.l.b16 %v539
        %v585 = vunpack.c.l.b16 %v540
        %v586 = vunpack.c.l.b16 %v541
        %v587 = vpack.c.b16 %v572, %v571
        %v588 = vpack.c.b16 %v574, %v573
        %v589 = vpack.c.b16 %v576, %v575
        %v590 = vpack.c.b16 %v578, %v577
        %v591 = vpack.c.b16 %v580, %v579
        %v592 = vpack.c.b16 %v582, %v581
        %v593 = vpack.c.b16 %v584, %v583
        %v594 = vpack.c.b16 %v586, %v585
        %603 = vmatprep.subr.bf16.mxu0 0
        %604 = vmatpush1.bf16.msra.mxu0 %v587
        %605 = vmatprep.subr.bf16.mxu0 0
        %606 = vmatpush1.bf16.msra.mxu0 %v588
        %607 = vmatprep.subr.bf16.mxu0 0
        %608 = vmatpush1.bf16.msra.mxu0 %v589
        %609 = vmatprep.subr.bf16.mxu0 0
        %610 = vmatpush1.bf16.msra.mxu0 %v590
        %611 = vmatprep.subr.bf16.mxu0 0
        %612 = vmatpush1.bf16.msra.mxu0 %v591
        %613 = vmatprep.subr.bf16.mxu0 0
        %614 = vmatpush1.bf16.msra.mxu0 %v592
        %615 = vmatprep.subr.bf16.mxu0 0
        %616 = vmatpush1.bf16.msra.mxu0 %v593
        %617 = vmatprep.subr.bf16.mxu0 0
        %618 = vmatpush1.bf16.msra.mxu0 %v594
        %619 = vmatprep.subr.bf16.mxu0 0
        %620 = vmatpush1.bf16.msra.mxu0 0
        %621 = vmatprep.subr.bf16.mxu0 0
        %622 = vmatpush1.bf16.msra.mxu0 0
        %623 = vmatprep.subr.bf16.mxu0 0
        %624 = vmatpush1.bf16.msra.mxu0 0
        %625 = vmatprep.subr.bf16.mxu0 0
        %626 = vmatpush1.bf16.msra.mxu0 0
        %627 = vmatprep.subr.bf16.mxu0 0
        %628 = vmatpush1.bf16.msra.mxu0 0
        %629 = vmatprep.subr.bf16.mxu0 0
        %630 = vmatpush1.bf16.msra.mxu0 0
        %631 = vmatprep.subr.bf16.mxu0 0
        %632 = vmatpush1.bf16.msra.mxu0 0
        %633 = vmatprep.subr.bf16.mxu0 0
        %634 = vmatpush1.bf16.msra.mxu0 0
        %635 = vmatprep.mubr.bf16.mxu0 0
        %636 = vmatmul.mubr.bf16.gmra.mrb[0].mxu0 %v553
        %v637 = vpop.f32.mrb[0].mxu0
        %v638 = vadd.f32 %v547, %v637
        %v639 = vpop.f32.mrb[0].mxu0
        %v640 = vpop.f32.mrb[0].mxu0
        %v641 = vadd.f32 %v547, %v640
        %v642 = vpop.f32.mrb[0].mxu0
        %643 = vdwg.mxu0
        %645 = vset.pattern.permute.xlu0 0
        %646 = vperm.xlu0 %645, %v522
        %v647 = vpop.permute.xlu0 %646
        %650 = vset.pattern.permute.xlu0 0
        %651 = vperm.xlu0 %650, %v523
        %v652 = vpop.permute.xlu0 %651
        %v654 = vsub.f32 %v638, %v647
        %v655 = vsub.f32 %v641, %v652
        %656 = vst [vmem:[%s334] sm:$0xff] %v654
        %657 = vst [vmem:[%s334 + $0x8] sm:$0xff] %v655
      $region48: #{cat_model_forward.2} parent=39 // pred_fallthru
        _
      %s658 = smul.u32 2, %s22
      %p659 = scmp.lt.s32.totalorder %s21, 1
      %s660 = scalar_select %p659, %s21, 1
      %p661 = scmp.lt.s32.totalorder %s658, 1
      %s662 = scalar_select %p661, %s658, 1
      %s663 = smul.addr %s660, 2
      %s664 = sadd.s32 %s662, %s663
      %s665 = smul.addr %s664, 8
      %s666 = scalar_lea.vmem %s5, %s665
      // Predicated region
      $region49: #{cat_model_forward.2} parent=39 // pred_check
        %p667 = pneg %p187
      $region50: #{cat_model_forward.2} parent=39 // pred_check_branch
        %669 = sbr.rel (%p667) target = $region52
      $region51: #{cat_model_forward.2} parent=39 // pred_region
        %s670 = smul.u32 2, %s22
      $region52: #{cat_model_forward.2} parent=39 // pred_fallthru
        _
    $region40: #{cat_model_forward.2} parent=5 // pred_fallthru
      _
    %p671 = scmp.le.s32.totalorder 2, %s11
    // Predicated region
    $region53: #{cat_model_forward.2} parent=5 // pred_check
      %p672 = pneg %p671
    $region54: #{cat_model_forward.2} parent=5 // pred_check_branch
      %674 = sbr.rel (%p672) target = $region56
    $region55: #{cat_model_forward.2} parent=5 // pred_region
      %s675 = ssub.s32 %s11, 2
      // Predicated region
      $region57: #{cat_model_forward.2} parent=55 // pred_check
        %p676 = pneg %p193
      $region58: #{cat_model_forward.2} parent=55 // pred_check_branch
        %678 = sbr.rel (%p676) target = $region60
      $region59: #{cat_model_forward.2} parent=55 // pred_region
        %s679 = smul.u32 2, %s25
        %p680 = scmp.lt.s32.totalorder %s24, 1
        %s681 = scalar_select %p680, %s24, 1
        %p682 = scmp.lt.s32.totalorder %s679, 1
        %s683 = scalar_select %p682, %s679, 1
        %s684 = smul.addr %s681, 2
        %s685 = sadd.s32 %s683, %s684
        %s686 = smul.addr %s685, 8
        %s687 = scalar_lea.vmem %s5, %s686
      $region60: #{cat_model_forward.2} parent=55 // pred_fallthru
        _
    $region56: #{cat_model_forward.2} parent=5 // pred_fallthru
      _
  $region6: #{cat_model_forward.2} parent=0 // loop_footer
    %s15 = sadd.s32 1, %s11
  $region7: #{cat_model_forward.2} parent=0 // loop_footer_branch
    %10 = sbr.rel target = $region3
  $region8: #{cat_model_forward.2} parent=0 // loop_exit
    _

</llo_original>
